<compile_context>
chip_gen: v6e
topology: v6e:2x2x1
jax: 0.10.0
libtpu: 0.0.40
codegen_flags: <defaults>
</compile_context>

<pallas_src>
import functools

import jax
import jax.numpy as jnp
import numpy as np
from jax import lax
from jax.experimental import pallas as pl
from jax.experimental.pallas import tpu as pltpu

EPS = 1e-5


# ------------------------------- kernels -------------------------------------

def _conv3x3_rows(x, wk_ref, h):
    """3x3 SAME conv on a (TH, W*Cin) row slab covering whole images.

    x       : (TH, W*Cin) rows (TH is a multiple of H, tiles start on image
              boundaries), W & Cin fused into lanes.
    wk_ref  : (3, W*Cin, W*Cout) block-Toeplitz weights, one per ky tap
              (SAME padding along W is encoded in the missing off-band blocks).
    returns : (TH, W*Cout) f32 accumulator.

    The +-1-row shifted operands come from pltpu.roll (aligned slabs, XLU slot);
    rows at image boundaries are zero-masked (SAME padding along H), which also
    kills the roll wrap-around rows since tile edges coincide with image edges.
    """
    th = x.shape[0]
    rows = lax.broadcasted_iota(jnp.int32, (th, 1), 0)
    # row r of x_up holds input row r-1 ; zero where r is an image's first row
    x_up = jnp.where((rows % h) == 0, 0.0, pltpu.roll(x, shift=1, axis=0))
    # row r of x_dn holds input row r+1 ; zero where r is an image's last row
    x_dn = jnp.where((rows % h) == h - 1, 0.0, pltpu.roll(x, shift=th - 1, axis=0))
    return (jnp.dot(x_up, wk_ref[0], preferred_element_type=jnp.float32)
            + jnp.dot(x, wk_ref[1], preferred_element_type=jnp.float32)
            + jnp.dot(x_dn, wk_ref[2], preferred_element_type=jnp.float32))


def _conv1_kernel(x_ref, wk_ref, y_ref, st_ref, *, h):
    """conv1 (3 block-Toeplitz matmuls) + per-tile partial BN1 sums."""
    acc = _conv3x3_rows(x_ref[...], wk_ref, h)
    y_ref[...] = acc.astype(y_ref.dtype)
    st_ref[0, 0:1, :] = jnp.sum(acc, axis=0, keepdims=True)
    st_ref[0, 1:2, :] = jnp.sum(acc * acc, axis=0, keepdims=True)


def _bn_relu_conv2_kernel(y1_ref, scale_ref, shift_ref, wk_ref, y2_ref, st_ref, *, h):
    """Fused BN1 (folded scale/shift) + ReLU -> conv2 + per-tile partial BN2 sums."""
    a = jnp.maximum(y1_ref[...] * scale_ref[...] + shift_ref[...], 0.0)
    acc = _conv3x3_rows(a, wk_ref, h)
    y2_ref[...] = acc.astype(y2_ref.dtype)
    st_ref[0, 0:1, :] = jnp.sum(acc, axis=0, keepdims=True)
    st_ref[0, 1:2, :] = jnp.sum(acc * acc, axis=0, keepdims=True)


# ---------------------------- wrapper helpers ---------------------------------

def _toeplitz_weights(w, width):
    """HWIO (3,3,Cin,Cout) -> (3, W*Cin, W*Cout) block-Toeplitz matmul weights.
    SAME zero-padding along W is encoded by the missing off-band blocks."""
    mats = []
    for ky in range(3):
        m = None
        for dx in (-1, 0, 1):
            term = jnp.kron(jnp.eye(width, k=-dx, dtype=jnp.float32), w[ky, dx + 1])
            m = term if m is None else m + term
        mats.append(m)
    return jnp.stack(mats, axis=0)


def _finalize_stats(st, gamma, beta, width, cout, count):
    """Tiny reduction of per-tile partial sums -> per-lane BN scale/shift rows.
    st: (n_tiles, 2, W*Cout), row 0 = sum, row 1 = sum of squares."""
    s = st[:, 0, :].sum(axis=0).reshape(width, cout).sum(axis=0)
    sq = st[:, 1, :].sum(axis=0).reshape(width, cout).sum(axis=0)
    mean = s / count
    var = sq / count - mean * mean          # biased var (training-mode BN)
    scale = gamma * lax.rsqrt(var + EPS)
    shift = beta - mean * scale
    return (jnp.tile(scale, width).reshape(1, width * cout),
            jnp.tile(shift, width).reshape(1, width * cout))


def _pick_imgs_per_tile(n, h, target_rows=256):
    """Whole images per row-tile: tile rows <= ~target, and >=2 grid steps when
    N>=2 so both v7x TensorCores get work. Must divide N."""
    best = 1
    for d in range(1, n + 1):
        if n % d != 0:
            continue
        if d * h > target_rows:
            continue
        if n >= 2 and n // d < 2:
            continue
        best = d
    return best


# ------------------------------ forward pass ----------------------------------

def conv_block_forward(x_nchw, params):
    """Conv_block.forward: NCHW float32 -> NCHW float32 (training-mode BN)."""
    n, cin, h, w = x_nchw.shape
    cout = params["w1"].shape[-1]
    d_in, d_mid = w * cin, w * cout

    imgs = _pick_imgs_per_tile(n, h)
    th = imgs * h                      # rows per tile (multiple of H)
    n_t = (n * h) // th

    # (N, C, H, W) -> (N*H, W*C): batch+rows in sublanes, W & C fused in lanes
    # (lane-dense when W*C % 128 == 0; here W*Cout = 128).
    x2d = jnp.transpose(x_nchw, (0, 2, 3, 1)).reshape(n * h, d_in)
    wk1 = _toeplitz_weights(params["w1"], w)   # (3, W*Cin,  W*Cout)
    wk2 = _toeplitz_weights(params["w2"], w)   # (3, W*Cout, W*Cout)
    # NOTE: conv biases b1/b2 are not applied in the kernels -- training-mode
    # BN's batch-mean subtraction cancels them exactly.

    cparams = pltpu.CompilerParams(dimension_semantics=("parallel",))
    grid = (n_t,)

    def row_spec(d):
        return pl.BlockSpec((th, d), lambda i: (i, 0))

    def st_spec(d):
        return pl.BlockSpec((1, 2, d), lambda i: (i, 0, 0))

    def wk_spec(d_from, d_to):
        return pl.BlockSpec((3, d_from, d_to), lambda i: (0, 0, 0))

    def vec_spec(d):
        return pl.BlockSpec((1, d), lambda i: (0, 0))

    # ---- pass 1: conv1 + partial BN1 statistics ------------------------------
    y1, st1 = pl.pallas_call(
        functools.partial(_conv1_kernel, h=h),
        grid=grid,
        in_specs=[row_spec(d_in), wk_spec(d_in, d_mid)],
        out_specs=[row_spec(d_mid), st_spec(d_mid)],
        out_shape=[jax.ShapeDtypeStruct((n * h, d_mid), jnp.float32),
                   jax.ShapeDtypeStruct((n_t, 2, d_mid), jnp.float32)],
        compiler_params=cparams,
    )(x2d, wk1)
    scale1, shift1 = _finalize_stats(st1, params["g1"], params["be1"], w, cout, n * h * w)

    # ---- pass 2: BN1 + ReLU fused with conv2 + partial BN2 statistics --------
    y2, st2 = pl.pallas_call(
        functools.partial(_bn_relu_conv2_kernel, h=h),
        grid=grid,
        in_specs=[row_spec(d_mid), vec_spec(d_mid), vec_spec(d_mid),
                  wk_spec(d_mid, d_mid)],
        out_specs=[row_spec(d_mid), st_spec(d_mid)],
        out_shape=[jax.ShapeDtypeStruct((n * h, d_mid), jnp.float32),
                   jax.ShapeDtypeStruct((n_t, 2, d_mid), jnp.float32)],
        compiler_params=cparams,
    )(y1, scale1, shift1, wk2)
    scale2, shift2 = _finalize_stats(st2, params["g2"], params["be2"], w, cout, n * h * w)

    # ---- BN2 + ReLU epilogue: plain jnp so XLA fuses it with the final
    # reshape/transpose (a third pallas_call would cost more in launch overhead
    # than the work itself).
    out = jnp.maximum(y2 * scale2 + shift2, 0.0)
    return jnp.transpose(out.reshape(n, h, w, cout), (0, 3, 1, 2))


# -------------------- pure-JAX reference (correctness check) ------------------

def _ref_stage(x, w, b, g, be):
    y = lax.conv_general_dilated(
        x, w, window_strides=(1, 1), padding="SAME",
        dimension_numbers=("NHWC", "HWIO", "NHWC")) + b
    mean = y.mean(axis=(0, 1, 2))
    var = ((y - mean) ** 2).mean(axis=(0, 1, 2))
    y = (y - mean) * lax.rsqrt(var + EPS) * g + be
    return jnp.maximum(y, 0.0)


def ref_forward(x_nchw, p):
    x = jnp.transpose(x_nchw, (0, 2, 3, 1))
    y = _ref_stage(x, p["w1"], p["b1"], p["g1"], p["be1"])
    y = _ref_stage(y, p["w2"], p["b2"], p["g2"], p["be2"])
    return jnp.transpose(y, (0, 3, 1, 2))


def init_params(key, in_channels, out_channels):
    k1, k2, k3, k4 = jax.random.split(key, 4)
    fan1 = in_channels * 9
    fan2 = out_channels * 9
    return {
        "w1": jax.random.normal(k1, (3, 3, in_channels, out_channels),
                                jnp.float32) / np.sqrt(fan1),
        "b1": jax.random.normal(k2, (out_channels,), jnp.float32) * 0.01,
        "g1": jnp.ones((out_channels,), jnp.float32),
        "be1": jnp.zeros((out_channels,), jnp.float32),
        "w2": jax.random.normal(k3, (3, 3, out_channels, out_channels),
                                jnp.float32) / np.sqrt(fan2),
        "b2": jax.random.normal(k4, (out_channels,), jnp.float32) * 0.01,
        "g2": jnp.ones((out_channels,), jnp.float32),
        "be2": jnp.zeros((out_channels,), jnp.float32),
    }


if __name__ == "__main__":
    key = jax.random.PRNGKey(0)
    kx, kp = jax.random.split(key)

    N, Cin, Cout, H, W = 2, 4, 8, 16, 16
    x = jax.random.normal(kx, (N, Cin, H, W), jnp.float32)          # NCHW, PyTorch-style
    params = init_params(kp, Cin, Cout)

    out = jax.block_until_ready(jax.jit(conv_block_forward)(x, params))
    ref = jax.block_until_ready(ref_forward(x, params))

    assert out.shape == (N, Cout, H, W)
    np.testing.assert_allclose(np.asarray(out), np.asarray(ref),
                               rtol=1e-4, atol=1e-4)
    print("KERNEL_OK")
</pallas_src>

<mosaic_0001>
module attributes {stable_mosaic.version = 11 : i64} {
  func.func @_conv1_kernel(%arg0: i32, %arg1: memref<16x64xf32, #tpu.memory_space<vmem>>, %arg2: memref<3x64x128xf32, #tpu.memory_space<vmem>>, %arg3: memref<16x128xf32, #tpu.memory_space<vmem>>, %arg4: memref<1x2x128xf32, #tpu.memory_space<vmem>>) attributes {dimension_semantics = [#tpu.dimension_semantics<parallel>], iteration_bounds = array<i64: 2>, scalar_prefetch = 0 : i64, scratch_operands = 0 : i64, tpu.core_type = #tpu.core_type<tc>, window_params = [{transform_indices = @transform_0, window_bounds = array<i64: 16, 64>}, {pipeline_mode = #tpu.pipeline_mode<synchronous>, transform_indices = @transform_1, window_bounds = array<i64: 3, 64, 128>}, {transform_indices = @transform_2, window_bounds = array<i64: 16, 128>}, {transform_indices = @transform_3, window_bounds = array<i64: 1, 2, 128>}]} {
    %c0 = arith.constant 0 : index
    %c0_0 = arith.constant 0 : index
    %0 = vector.load %arg1[%c0, %c0_0] : memref<16x64xf32, #tpu.memory_space<vmem>>, vector<16x64xf32>
    %1 = tpu.iota {dimensions = array<i32: 0>} : vector<16x1xi32>
    %c16_i32 = arith.constant 16 : i32
    %c0_i32 = arith.constant 0 : i32
    %2 = arith.cmpi eq, %c16_i32, %c0_i32 : i32
    %c1_i32 = arith.constant 1 : i32
    %3 = arith.select %2, %c1_i32, %c16_i32 : i32
    %4 = vector.broadcast %3 : i32 to vector<16x1xi32>
    %5 = arith.remsi %1, %4 : vector<16x1xi32>
    %c0_i32_1 = arith.constant 0 : i32
    %6 = vector.broadcast %c0_i32_1 : i32 to vector<16x1xi32>
    %7 = arith.cmpi ne, %5, %6 : vector<16x1xi32>
    %c0_i32_2 = arith.constant 0 : i32
    %8 = vector.broadcast %c0_i32_2 : i32 to vector<16x1xi32>
    %9 = arith.cmpi slt, %5, %8 : vector<16x1xi32>
    %c0_i32_3 = arith.constant 0 : i32
    %10 = arith.cmpi slt, %3, %c0_i32_3 : i32
    %11 = vector.broadcast %10 : i1 to vector<16x1xi1>
    %12 = vector.broadcast %11 : vector<16x1xi1> to vector<16x1xi1>
    %13 = arith.xori %9, %12 : vector<16x1xi1>
    %14 = arith.andi %13, %7 : vector<16x1xi1>
    %15 = vector.broadcast %3 : i32 to vector<16x1xi32>
    %16 = arith.addi %5, %15 : vector<16x1xi32>
    %17 = arith.select %14, %16, %5 : vector<16x1xi1>, vector<16x1xi32>
    %c0_i32_4 = arith.constant 0 : i32
    %18 = vector.broadcast %c0_i32_4 : i32 to vector<16x1xi32>
    %19 = arith.cmpi eq, %17, %18 : vector<16x1xi32>
    %c1_i32_5 = arith.constant 1 : i32
    %20 = tpu.dynamic_rotate %0 by %c1_i32_5 dim 0 : vector<16x64xf32>, i32 -> vector<16x64xf32>
    %cst = arith.constant 0.000000e+00 : f32
    %21 = vector.shape_cast %19 : vector<16x1xi1> to vector<16x1xi1>
    %22 = vector.broadcast %21 : vector<16x1xi1> to vector<16x64xi1>
    %23 = vector.broadcast %cst : f32 to vector<16x64xf32>
    %24 = arith.select %22, %23, %20 : vector<16x64xi1>, vector<16x64xf32>
    %c16_i32_6 = arith.constant 16 : i32
    %c0_i32_7 = arith.constant 0 : i32
    %25 = arith.cmpi eq, %c16_i32_6, %c0_i32_7 : i32
    %c1_i32_8 = arith.constant 1 : i32
    %26 = arith.select %25, %c1_i32_8, %c16_i32_6 : i32
    %27 = vector.broadcast %26 : i32 to vector<16x1xi32>
    %28 = arith.remsi %1, %27 : vector<16x1xi32>
    %c0_i32_9 = arith.constant 0 : i32
    %29 = vector.broadcast %c0_i32_9 : i32 to vector<16x1xi32>
    %30 = arith.cmpi ne, %28, %29 : vector<16x1xi32>
    %c0_i32_10 = arith.constant 0 : i32
    %31 = vector.broadcast %c0_i32_10 : i32 to vector<16x1xi32>
    %32 = arith.cmpi slt, %28, %31 : vector<16x1xi32>
    %c0_i32_11 = arith.constant 0 : i32
    %33 = arith.cmpi slt, %26, %c0_i32_11 : i32
    %34 = vector.broadcast %33 : i1 to vector<16x1xi1>
    %35 = vector.broadcast %34 : vector<16x1xi1> to vector<16x1xi1>
    %36 = arith.xori %32, %35 : vector<16x1xi1>
    %37 = arith.andi %36, %30 : vector<16x1xi1>
    %38 = vector.broadcast %26 : i32 to vector<16x1xi32>
    %39 = arith.addi %28, %38 : vector<16x1xi32>
    %40 = arith.select %37, %39, %28 : vector<16x1xi1>, vector<16x1xi32>
    %c15_i32 = arith.constant 15 : i32
    %41 = vector.broadcast %c15_i32 : i32 to vector<16x1xi32>
    %42 = arith.cmpi eq, %40, %41 : vector<16x1xi32>
    %c15_i32_12 = arith.constant 15 : i32
    %43 = tpu.dynamic_rotate %0 by %c15_i32_12 dim 0 : vector<16x64xf32>, i32 -> vector<16x64xf32>
    %cst_13 = arith.constant 0.000000e+00 : f32
    %44 = vector.shape_cast %42 : vector<16x1xi1> to vector<16x1xi1>
    %45 = vector.broadcast %44 : vector<16x1xi1> to vector<16x64xi1>
    %46 = vector.broadcast %cst_13 : f32 to vector<16x64xf32>
    %47 = arith.select %45, %46, %43 : vector<16x64xi1>, vector<16x64xf32>
    %c0_14 = arith.constant 0 : index
    %c0_15 = arith.constant 0 : index
    %c0_16 = arith.constant 0 : index
    %48 = vector.load %arg2[%c0_14, %c0_15, %c0_16] : memref<3x64x128xf32, #tpu.memory_space<vmem>>, vector<1x64x128xf32>
    %49 = vector.shape_cast %48 : vector<1x64x128xf32> to vector<64x128xf32>
    %cst_17 = arith.constant dense<0.000000e+00> : vector<16x128xf32>
    %50 = tpu.matmul %24, %49, %cst_17 {dimension_numbers = #tpu.dot_dimension_numbers<[1], [0], [0], [1], [0, 0, 1, 1], [], []>} : vector<16x64xf32>, vector<64x128xf32>, vector<16x128xf32> -> vector<16x128xf32>
    %c1 = arith.constant 1 : index
    %c0_18 = arith.constant 0 : index
    %c0_19 = arith.constant 0 : index
    %51 = vector.load %arg2[%c1, %c0_18, %c0_19] : memref<3x64x128xf32, #tpu.memory_space<vmem>>, vector<1x64x128xf32>
    %52 = vector.shape_cast %51 : vector<1x64x128xf32> to vector<64x128xf32>
    %cst_20 = arith.constant dense<0.000000e+00> : vector<16x128xf32>
    %53 = tpu.matmul %0, %52, %cst_20 {dimension_numbers = #tpu.dot_dimension_numbers<[1], [0], [0], [1], [0, 0, 1, 1], [], []>} : vector<16x64xf32>, vector<64x128xf32>, vector<16x128xf32> -> vector<16x128xf32>
    %54 = arith.addf %50, %53 : vector<16x128xf32>
    %c2 = arith.constant 2 : index
    %c0_21 = arith.constant 0 : index
    %c0_22 = arith.constant 0 : index
    %55 = vector.load %arg2[%c2, %c0_21, %c0_22] : memref<3x64x128xf32, #tpu.memory_space<vmem>>, vector<1x64x128xf32>
    %56 = vector.shape_cast %55 : vector<1x64x128xf32> to vector<64x128xf32>
    %cst_23 = arith.constant dense<0.000000e+00> : vector<16x128xf32>
    %57 = tpu.matmul %47, %56, %cst_23 {dimension_numbers = #tpu.dot_dimension_numbers<[1], [0], [0], [1], [0, 0, 1, 1], [], []>} : vector<16x64xf32>, vector<64x128xf32>, vector<16x128xf32> -> vector<16x128xf32>
    %58 = arith.addf %54, %57 : vector<16x128xf32>
    %c0_24 = arith.constant 0 : index
    %c0_25 = arith.constant 0 : index
    %59 = vector.load %arg3[%c0_24, %c0_25] : memref<16x128xf32, #tpu.memory_space<vmem>>, vector<16x128xf32>
    tpu.vector_store %arg3[%c0_24, %c0_25], %58 {strides = array<i32>} : memref<16x128xf32, #tpu.memory_space<vmem>>, vector<16x128xf32>,
    %cst_26 = arith.constant dense<0.000000e+00> : vector<128xf32>
    %60 = vector.multi_reduction <add>, %58, %cst_26 [0] : vector<16x128xf32> to vector<128xf32>
    %61 = vector.shape_cast %60 : vector<128xf32> to vector<1x128xf32>
    %c0_27 = arith.constant 0 : index
    %c0_28 = arith.constant 0 : index
    %c0_29 = arith.constant 0 : index
    %62 = vector.load %arg4[%c0_27, %c0_28, %c0_29] : memref<1x2x128xf32, #tpu.memory_space<vmem>>, vector<1x1x128xf32>
    %63 = vector.shape_cast %62 : vector<1x1x128xf32> to vector<1x128xf32>
    %64 = vector.shape_cast %61 : vector<1x128xf32> to vector<1x1x128xf32>
    tpu.vector_store %arg4[%c0_27, %c0_28, %c0_29], %64 {strides = array<i32>} : memref<1x2x128xf32, #tpu.memory_space<vmem>>, vector<1x1x128xf32>,
    %65 = arith.mulf %58, %58 : vector<16x128xf32>
    %cst_30 = arith.constant dense<0.000000e+00> : vector<128xf32>
    %66 = vector.multi_reduction <add>, %65, %cst_30 [0] : vector<16x128xf32> to vector<128xf32>
    %67 = vector.shape_cast %66 : vector<128xf32> to vector<1x128xf32>
    %c0_31 = arith.constant 0 : index
    %c1_32 = arith.constant 1 : index
    %c0_33 = arith.constant 0 : index
    %68 = vector.load %arg4[%c0_31, %c1_32, %c0_33] : memref<1x2x128xf32, #tpu.memory_space<vmem>>, vector<1x1x128xf32>
    %69 = vector.shape_cast %68 : vector<1x1x128xf32> to vector<1x128xf32>
    %70 = vector.shape_cast %67 : vector<1x128xf32> to vector<1x1x128xf32>
    tpu.vector_store %arg4[%c0_31, %c1_32, %c0_33], %70 {strides = array<i32>} : memref<1x2x128xf32, #tpu.memory_space<vmem>>, vector<1x1x128xf32>,
    return
  }
  func.func @transform_0(%arg0: i32) -> (i32, i32) {
    %c0_i32 = arith.constant 0 : i32
    %c0_i32_0 = arith.constant 0 : i32
    return %arg0, %c0_i32 : i32, i32
  }
  func.func @transform_1(%arg0: i32) -> (i32, i32, i32) {
    %c0_i32 = arith.constant 0 : i32
    %c0_i32_0 = arith.constant 0 : i32
    %c0_i32_1 = arith.constant 0 : i32
    %c0_i32_2 = arith.constant 0 : i32
    return %c0_i32, %c0_i32_0, %c0_i32_1 : i32, i32, i32
  }
  func.func @transform_2(%arg0: i32) -> (i32, i32) {
    %c0_i32 = arith.constant 0 : i32
    %c0_i32_0 = arith.constant 0 : i32
    return %arg0, %c0_i32 : i32, i32
  }
  func.func @transform_3(%arg0: i32) -> (i32, i32, i32) {
    %c0_i32 = arith.constant 0 : i32
    %c0_i32_0 = arith.constant 0 : i32
    %c0_i32_1 = arith.constant 0 : i32
    return %arg0, %c0_i32, %c0_i32_0 : i32, i32, i32
  }
}

module attributes {stable_mosaic.version = 11 : i64} {
  func.func @_bn_relu_conv2_kernel(%arg0: i32, %arg1: memref<16x128xf32, #tpu.memory_space<vmem>>, %arg2: memref<1x128xf32, #tpu.memory_space<vmem>>, %arg3: memref<1x128xf32, #tpu.memory_space<vmem>>, %arg4: memref<3x128x128xf32, #tpu.memory_space<vmem>>, %arg5: memref<16x128xf32, #tpu.memory_space<vmem>>, %arg6: memref<1x2x128xf32, #tpu.memory_space<vmem>>) attributes {dimension_semantics = [#tpu.dimension_semantics<parallel>], iteration_bounds = array<i64: 2>, scalar_prefetch = 0 : i64, scratch_operands = 0 : i64, tpu.core_type = #tpu.core_type<tc>, window_params = [{transform_indices = @transform_0, window_bounds = array<i64: 16, 128>}, {pipeline_mode = #tpu.pipeline_mode<synchronous>, transform_indices = @transform_1, window_bounds = array<i64: 1, 128>}, {pipeline_mode = #tpu.pipeline_mode<synchronous>, transform_indices = @transform_2, window_bounds = array<i64: 1, 128>}, {pipeline_mode = #tpu.pipeline_mode<synchronous>, transform_indices = @transform_3, window_bounds = array<i64: 3, 128, 128>}, {transform_indices = @transform_4, window_bounds = array<i64: 16, 128>}, {transform_indices = @transform_5, window_bounds = array<i64: 1, 2, 128>}]} {
    %c0 = arith.constant 0 : index
    %c0_0 = arith.constant 0 : index
    %0 = vector.load %arg1[%c0, %c0_0] : memref<16x128xf32, #tpu.memory_space<vmem>>, vector<16x128xf32>
    %c0_1 = arith.constant 0 : index
    %c0_2 = arith.constant 0 : index
    %1 = vector.load %arg2[%c0_1, %c0_2] : memref<1x128xf32, #tpu.memory_space<vmem>>, vector<1x128xf32>
    %2 = vector.broadcast %1 : vector<1x128xf32> to vector<16x128xf32>
    %3 = arith.mulf %0, %2 : vector<16x128xf32>
    %c0_3 = arith.constant 0 : index
    %c0_4 = arith.constant 0 : index
    %4 = vector.load %arg3[%c0_3, %c0_4] : memref<1x128xf32, #tpu.memory_space<vmem>>, vector<1x128xf32>
    %5 = vector.broadcast %4 : vector<1x128xf32> to vector<16x128xf32>
    %6 = arith.addf %3, %5 : vector<16x128xf32>
    %cst = arith.constant 0.000000e+00 : f32
    %7 = vector.broadcast %cst : f32 to vector<16x128xf32>
    %8 = arith.maximumf %6, %7 : vector<16x128xf32>
    %9 = tpu.iota {dimensions = array<i32: 0>} : vector<16x1xi32>
    %c16_i32 = arith.constant 16 : i32
    %c0_i32 = arith.constant 0 : i32
    %10 = arith.cmpi eq, %c16_i32, %c0_i32 : i32
    %c1_i32 = arith.constant 1 : i32
    %11 = arith.select %10, %c1_i32, %c16_i32 : i32
    %12 = vector.broadcast %11 : i32 to vector<16x1xi32>
    %13 = arith.remsi %9, %12 : vector<16x1xi32>
    %c0_i32_5 = arith.constant 0 : i32
    %14 = vector.broadcast %c0_i32_5 : i32 to vector<16x1xi32>
    %15 = arith.cmpi ne, %13, %14 : vector<16x1xi32>
    %c0_i32_6 = arith.constant 0 : i32
    %16 = vector.broadcast %c0_i32_6 : i32 to vector<16x1xi32>
    %17 = arith.cmpi slt, %13, %16 : vector<16x1xi32>
    %c0_i32_7 = arith.constant 0 : i32
    %18 = arith.cmpi slt, %11, %c0_i32_7 : i32
    %19 = vector.broadcast %18 : i1 to vector<16x1xi1>
    %20 = vector.broadcast %19 : vector<16x1xi1> to vector<16x1xi1>
    %21 = arith.xori %17, %20 : vector<16x1xi1>
    %22 = arith.andi %21, %15 : vector<16x1xi1>
    %23 = vector.broadcast %11 : i32 to vector<16x1xi32>
    %24 = arith.addi %13, %23 : vector<16x1xi32>
    %25 = arith.select %22, %24, %13 : vector<16x1xi1>, vector<16x1xi32>
    %c0_i32_8 = arith.constant 0 : i32
    %26 = vector.broadcast %c0_i32_8 : i32 to vector<16x1xi32>
    %27 = arith.cmpi eq, %25, %26 : vector<16x1xi32>
    %c1_i32_9 = arith.constant 1 : i32
    %28 = tpu.dynamic_rotate %8 by %c1_i32_9 dim 0 : vector<16x128xf32>, i32 -> vector<16x128xf32>
    %cst_10 = arith.constant 0.000000e+00 : f32
    %29 = vector.shape_cast %27 : vector<16x1xi1> to vector<16x1xi1>
    %30 = vector.broadcast %29 : vector<16x1xi1> to vector<16x128xi1>
    %31 = vector.broadcast %cst_10 : f32 to vector<16x128xf32>
    %32 = arith.select %30, %31, %28 : vector<16x128xi1>, vector<16x128xf32>
    %c16_i32_11 = arith.constant 16 : i32
    %c0_i32_12 = arith.constant 0 : i32
    %33 = arith.cmpi eq, %c16_i32_11, %c0_i32_12 : i32
    %c1_i32_13 = arith.constant 1 : i32
    %34 = arith.select %33, %c1_i32_13, %c16_i32_11 : i32
    %35 = vector.broadcast %34 : i32 to vector<16x1xi32>
    %36 = arith.remsi %9, %35 : vector<16x1xi32>
    %c0_i32_14 = arith.constant 0 : i32
    %37 = vector.broadcast %c0_i32_14 : i32 to vector<16x1xi32>
    %38 = arith.cmpi ne, %36, %37 : vector<16x1xi32>
    %c0_i32_15 = arith.constant 0 : i32
    %39 = vector.broadcast %c0_i32_15 : i32 to vector<16x1xi32>
    %40 = arith.cmpi slt, %36, %39 : vector<16x1xi32>
    %c0_i32_16 = arith.constant 0 : i32
    %41 = arith.cmpi slt, %34, %c0_i32_16 : i32
    %42 = vector.broadcast %41 : i1 to vector<16x1xi1>
    %43 = vector.broadcast %42 : vector<16x1xi1> to vector<16x1xi1>
    %44 = arith.xori %40, %43 : vector<16x1xi1>
    %45 = arith.andi %44, %38 : vector<16x1xi1>
    %46 = vector.broadcast %34 : i32 to vector<16x1xi32>
    %47 = arith.addi %36, %46 : vector<16x1xi32>
    %48 = arith.select %45, %47, %36 : vector<16x1xi1>, vector<16x1xi32>
    %c15_i32 = arith.constant 15 : i32
    %49 = vector.broadcast %c15_i32 : i32 to vector<16x1xi32>
    %50 = arith.cmpi eq, %48, %49 : vector<16x1xi32>
    %c15_i32_17 = arith.constant 15 : i32
    %51 = tpu.dynamic_rotate %8 by %c15_i32_17 dim 0 : vector<16x128xf32>, i32 -> vector<16x128xf32>
    %cst_18 = arith.constant 0.000000e+00 : f32
    %52 = vector.shape_cast %50 : vector<16x1xi1> to vector<16x1xi1>
    %53 = vector.broadcast %52 : vector<16x1xi1> to vector<16x128xi1>
    %54 = vector.broadcast %cst_18 : f32 to vector<16x128xf32>
    %55 = arith.select %53, %54, %51 : vector<16x128xi1>, vector<16x128xf32>
    %c0_19 = arith.constant 0 : index
    %c0_20 = arith.constant 0 : index
    %c0_21 = arith.constant 0 : index
    %56 = vector.load %arg4[%c0_19, %c0_20, %c0_21] : memref<3x128x128xf32, #tpu.memory_space<vmem>>, vector<1x128x128xf32>
    %57 = vector.shape_cast %56 : vector<1x128x128xf32> to vector<128x128xf32>
    %cst_22 = arith.constant dense<0.000000e+00> : vector<16x128xf32>
    %58 = tpu.matmul %32, %57, %cst_22 {dimension_numbers = #tpu.dot_dimension_numbers<[1], [0], [0], [1], [0, 0, 1, 1], [], []>} : vector<16x128xf32>, vector<128x128xf32>, vector<16x128xf32> -> vector<16x128xf32>
    %c1 = arith.constant 1 : index
    %c0_23 = arith.constant 0 : index
    %c0_24 = arith.constant 0 : index
    %59 = vector.load %arg4[%c1, %c0_23, %c0_24] : memref<3x128x128xf32, #tpu.memory_space<vmem>>, vector<1x128x128xf32>
    %60 = vector.shape_cast %59 : vector<1x128x128xf32> to vector<128x128xf32>
    %cst_25 = arith.constant dense<0.000000e+00> : vector<16x128xf32>
    %61 = tpu.matmul %8, %60, %cst_25 {dimension_numbers = #tpu.dot_dimension_numbers<[1], [0], [0], [1], [0, 0, 1, 1], [], []>} : vector<16x128xf32>, vector<128x128xf32>, vector<16x128xf32> -> vector<16x128xf32>
    %62 = arith.addf %58, %61 : vector<16x128xf32>
    %c2 = arith.constant 2 : index
    %c0_26 = arith.constant 0 : index
    %c0_27 = arith.constant 0 : index
    %63 = vector.load %arg4[%c2, %c0_26, %c0_27] : memref<3x128x128xf32, #tpu.memory_space<vmem>>, vector<1x128x128xf32>
    %64 = vector.shape_cast %63 : vector<1x128x128xf32> to vector<128x128xf32>
    %cst_28 = arith.constant dense<0.000000e+00> : vector<16x128xf32>
    %65 = tpu.matmul %55, %64, %cst_28 {dimension_numbers = #tpu.dot_dimension_numbers<[1], [0], [0], [1], [0, 0, 1, 1], [], []>} : vector<16x128xf32>, vector<128x128xf32>, vector<16x128xf32> -> vector<16x128xf32>
    %66 = arith.addf %62, %65 : vector<16x128xf32>
    %c0_29 = arith.constant 0 : index
    %c0_30 = arith.constant 0 : index
    %67 = vector.load %arg5[%c0_29, %c0_30] : memref<16x128xf32, #tpu.memory_space<vmem>>, vector<16x128xf32>
    tpu.vector_store %arg5[%c0_29, %c0_30], %66 {strides = array<i32>} : memref<16x128xf32, #tpu.memory_space<vmem>>, vector<16x128xf32>,
    %cst_31 = arith.constant dense<0.000000e+00> : vector<128xf32>
    %68 = vector.multi_reduction <add>, %66, %cst_31 [0] : vector<16x128xf32> to vector<128xf32>
    %69 = vector.shape_cast %68 : vector<128xf32> to vector<1x128xf32>
    %c0_32 = arith.constant 0 : index
    %c0_33 = arith.constant 0 : index
    %c0_34 = arith.constant 0 : index
    %70 = vector.load %arg6[%c0_32, %c0_33, %c0_34] : memref<1x2x128xf32, #tpu.memory_space<vmem>>, vector<1x1x128xf32>
    %71 = vector.shape_cast %70 : vector<1x1x128xf32> to vector<1x128xf32>
    %72 = vector.shape_cast %69 : vector<1x128xf32> to vector<1x1x128xf32>
    tpu.vector_store %arg6[%c0_32, %c0_33, %c0_34], %72 {strides = array<i32>} : memref<1x2x128xf32, #tpu.memory_space<vmem>>, vector<1x1x128xf32>,
    %73 = arith.mulf %66, %66 : vector<16x128xf32>
    %cst_35 = arith.constant dense<0.000000e+00> : vector<128xf32>
    %74 = vector.multi_reduction <add>, %73, %cst_35 [0] : vector<16x128xf32> to vector<128xf32>
    %75 = vector.shape_cast %74 : vector<128xf32> to vector<1x128xf32>
    %c0_36 = arith.constant 0 : index
    %c1_37 = arith.constant 1 : index
    %c0_38 = arith.constant 0 : index
    %76 = vector.load %arg6[%c0_36, %c1_37, %c0_38] : memref<1x2x128xf32, #tpu.memory_space<vmem>>, vector<1x1x128xf32>
    %77 = vector.shape_cast %76 : vector<1x1x128xf32> to vector<1x128xf32>
    %78 = vector.shape_cast %75 : vector<1x128xf32> to vector<1x1x128xf32>
    tpu.vector_store %arg6[%c0_36, %c1_37, %c0_38], %78 {strides = array<i32>} : memref<1x2x128xf32, #tpu.memory_space<vmem>>, vector<1x1x128xf32>,
    return
  }
  func.func @transform_0(%arg0: i32) -> (i32, i32) {
    %c0_i32 = arith.constant 0 : i32
    %c0_i32_0 = arith.constant 0 : i32
    return %arg0, %c0_i32 : i32, i32
  }
  func.func @transform_1(%arg0: i32) -> (i32, i32) {
    %c0_i32 = arith.constant 0 : i32
    %c0_i32_0 = arith.constant 0 : i32
    %c0_i32_1 = arith.constant 0 : i32
    return %c0_i32, %c0_i32_0 : i32, i32
  }
  func.func @transform_2(%arg0: i32) -> (i32, i32) {
    %c0_i32 = arith.constant 0 : i32
    %c0_i32_0 = arith.constant 0 : i32
    %c0_i32_1 = arith.constant 0 : i32
    return %c0_i32, %c0_i32_0 : i32, i32
  }
  func.func @transform_3(%arg0: i32) -> (i32, i32, i32) {
    %c0_i32 = arith.constant 0 : i32
    %c0_i32_0 = arith.constant 0 : i32
    %c0_i32_1 = arith.constant 0 : i32
    %c0_i32_2 = arith.constant 0 : i32
    return %c0_i32, %c0_i32_0, %c0_i32_1 : i32, i32, i32
  }
  func.func @transform_4(%arg0: i32) -> (i32, i32) {
    %c0_i32 = arith.constant 0 : i32
    %c0_i32_0 = arith.constant 0 : i32
    return %arg0, %c0_i32 : i32, i32
  }
  func.func @transform_5(%arg0: i32) -> (i32, i32, i32) {
    %c0_i32 = arith.constant 0 : i32
    %c0_i32_0 = arith.constant 0 : i32
    %c0_i32_1 = arith.constant 0 : i32
    return %arg0, %c0_i32, %c0_i32_0 : i32, i32, i32
  }
}

</mosaic_0001>

<llo_original>
// kernel: tile.28
$region0: #{tile.28}
  #allocation0 [shape = 's32[1]{0}', space=sflag, size = 0x4, scoped, tag = 'scoped memory for tile.28']
  %s0 = inlined_call_operand.vmem [shape: f32[8], index: 0, kind: input, shape index: {}]
  %s1 = inlined_call_operand.vmem [shape: f32[16,8], index: 1, kind: output, shape index: {}]
  // Predicated region
  $region2: #{tile.28} parent=0 // pred_check
    _
  $region3: #{tile.28} parent=0 // pred_check_branch
    %3 = sbr.rel (0) target = $region5
  $region4: #{tile.28} parent=0 // pred_region
    _
  $region5: #{tile.28} parent=0 // pred_fallthru
    _
  %v4 = vld [vmem:[%s0] ss:$0 sm:$0xff]
  %5 = vst [vmem:[%s1] sm:$0xff] %v4
  %s6 = scalar_lea.vmem %s1, 8
  %7 = vst [vmem:[%s6] sm:$0xff] %v4

// kernel: tile.29
$region0: #{tile.29}
  %s0 = inlined_call_operand.vmem [shape: f32[16,8], index: 0, kind: input, shape index: {}]
  %s1 = inlined_call_operand.vmem [shape: f32[1,128], index: 1, kind: output, shape index: {}]
  $region1: #{tile.29} parent=0
    #allocation0 [shape = 'u8[4096]{0}', space=vmem, size = 0x1000, scoped, tag = 'scoped mem for output reshape']
    %v2 = vld [vmem:[%s0] sm:$0x1]
    %vm3 = vcmask 64512
    %4 = vst.msk [vmem:[#allocation0] sm:$0x1] %vm3, %v2
    %s5 = scalar_lea.vmem %s0, 15
    %v6 = vld [vmem:[%s5] sm:$0x1]
    %7 = vrot.lane.b32.xlu0 %v6, 120
    %v8 = vpop.permute.xlu0 %7
    %vm9 = vcmask 1048512
    %10 = vst.msk [vmem:[#allocation0] sm:$0x1] %vm9, %v8
    %s11 = scalar_lea.vmem %s0, 14
    %v12 = vld [vmem:[%s11] sm:$0x1]
    %13 = vrot.lane.b32.xlu0 %v12, 112
    %v14 = vpop.permute.xlu0 %13
    %vm15 = vcmask 982912
    %16 = vst.msk [vmem:[#allocation0] sm:$0x1] %vm15, %v14
    %s17 = scalar_lea.vmem %s0, 13
    %v18 = vld [vmem:[%s17] sm:$0x1]
    %19 = vrot.lane.b32.xlu0 %v18, 104
    %v20 = vpop.permute.xlu0 %19
    %vm21 = vcmask 917312
    %22 = vst.msk [vmem:[#allocation0] sm:$0x1] %vm21, %v20
    %s23 = scalar_lea.vmem %s0, 12
    %v24 = vld [vmem:[%s23] sm:$0x1]
    %25 = vrot.lane.b32.xlu0 %v24, 96
    %v26 = vpop.permute.xlu0 %25
    %vm27 = vcmask 851712
    %28 = vst.msk [vmem:[#allocation0] sm:$0x1] %vm27, %v26
    %s29 = scalar_lea.vmem %s0, 11
    %v30 = vld [vmem:[%s29] sm:$0x1]
    %31 = vrot.lane.b32.xlu0 %v30, 88
    %v32 = vpop.permute.xlu0 %31
    %vm33 = vcmask 786112
    %34 = vst.msk [vmem:[#allocation0] sm:$0x1] %vm33, %v32
    %s35 = scalar_lea.vmem %s0, 10
    %v36 = vld [vmem:[%s35] sm:$0x1]
    %37 = vrot.lane.b32.xlu0 %v36, 80
    %v38 = vpop.permute.xlu0 %37
    %vm39 = vcmask 720512
    %40 = vst.msk [vmem:[#allocation0] sm:$0x1] %vm39, %v38
    %s41 = scalar_lea.vmem %s0, 9
    %v42 = vld [vmem:[%s41] sm:$0x1]
    %43 = vrot.lane.b32.xlu0 %v42, 72
    %v44 = vpop.permute.xlu0 %43
    %vm45 = vcmask 654912
    %46 = vst.msk [vmem:[#allocation0] sm:$0x1] %vm45, %v44
    %s47 = scalar_lea.vmem %s0, 8
    %v48 = vld [vmem:[%s47] sm:$0x1]
    %49 = vrot.lane.b32.xlu0 %v48, 64
    %v50 = vpop.permute.xlu0 %49
    %vm51 = vcmask 589312
    %52 = vst.msk [vmem:[#allocation0] sm:$0x1] %vm51, %v50
    %s53 = scalar_lea.vmem %s0, 7
    %v54 = vld [vmem:[%s53] sm:$0x1]
    %55 = vrot.lane.b32.xlu0 %v54, 56
    %v56 = vpop.permute.xlu0 %55
    %vm57 = vcmask 523712
    %58 = vst.msk [vmem:[#allocation0] sm:$0x1] %vm57, %v56
    %s59 = scalar_lea.vmem %s0, 6
    %v60 = vld [vmem:[%s59] sm:$0x1]
    %61 = vrot.lane.b32.xlu0 %v60, 48
    %v62 = vpop.permute.xlu0 %61
    %vm63 = vcmask 458112
    %64 = vst.msk [vmem:[#allocation0] sm:$0x1] %vm63, %v62
    %s65 = scalar_lea.vmem %s0, 5
    %v66 = vld [vmem:[%s65] sm:$0x1]
    %67 = vrot.lane.b32.xlu0 %v66, 40
    %v68 = vpop.permute.xlu0 %67
    %vm69 = vcmask 392512
    %70 = vst.msk [vmem:[#allocation0] sm:$0x1] %vm69, %v68
    %s71 = scalar_lea.vmem %s0, 4
    %v72 = vld [vmem:[%s71] sm:$0x1]
    %73 = vrot.lane.b32.xlu0 %v72, 32
    %v74 = vpop.permute.xlu0 %73
    %vm75 = vcmask 326912
    %76 = vst.msk [vmem:[#allocation0] sm:$0x1] %vm75, %v74
    %s77 = scalar_lea.vmem %s0, 3
    %v78 = vld [vmem:[%s77] sm:$0x1]
    %79 = vrot.lane.b32.xlu0 %v78, 24
    %v80 = vpop.permute.xlu0 %79
    %vm81 = vcmask 261312
    %82 = vst.msk [vmem:[#allocation0] sm:$0x1] %vm81, %v80
    %s83 = scalar_lea.vmem %s0, 2
    %v84 = vld [vmem:[%s83] sm:$0x1]
    %85 = vrot.lane.b32.xlu0 %v84, 16
    %v86 = vpop.permute.xlu0 %85
    %vm87 = vcmask 195712
    %88 = vst.msk [vmem:[#allocation0] sm:$0x1] %vm87, %v86
    %s89 = scalar_lea.vmem %s0, 1
    %v90 = vld [vmem:[%s89] sm:$0x1]
    %91 = vrot.lane.b32.xlu0 %v90, 8
    %v92 = vpop.permute.xlu0 %91
    %vm93 = vcmask 130112
    %94 = vst.msk [vmem:[#allocation0] sm:$0x1] %vm93, %v92
    %s96 = sshll.u32 1, 1
    %s97 = ssub.s32 %s96, 1
    %v99 = vld [vmem:[#allocation0] sm:%s97]
    %s100 = sshll.u32 1, 1
    %s101 = ssub.s32 %s100, 1
    %102 = vst [vmem:[%s1] sm:%s101] %v99

// kernel: conv_block_forward.2
$region0: #{conv_block_forward.2}
  #allocation0 [shape = 'u32[]', space=smem, size = 0x4, offset = 0x4, fixed_abs, tag = 'smem constant byte address 0x4 - core index']
  #allocation1 [shape = 'u32[144,128]{1,0:T(1,128)}', space=vmem, size = 0x12000, scoped, tag = 'internal scratch']
  %s0 = inlined_call_operand.vmem [shape: f32[32,64], index: 0, kind: input, shape index: {}]
  %s1 = inlined_call_operand.vmem [shape: f32[3,64,128], index: 1, kind: input, shape index: {}]
  %s2 = inlined_call_operand.vmem [shape: f32[32,128], index: 2, kind: output, shape index: {0}]
  %s3 = inlined_call_operand.vmem [shape: f32[2,2,128], index: 3, kind: output, shape index: {1}]
  %4 = xla_tuple %s2, %s3
  %s5 = sld [smem:[#allocation0]]
  $region49: #{conv_block_forward.2} parent=0
    _
  %s7 = ssub.s32 1, %s5
  %s8 = scalar_select 0, %s7, %s5
  loop: start=0, step=1, limit=4
  $region2: #{conv_block_forward.2} parent=0 // loop_pre_header
    _
  $region3: #{conv_block_forward.2} parent=0 // loop_header
    %s10 = sphi 0, %s14
    %p11 = scmp.ge.s32.totalorder %s10, 4
    %s20 = sphi 0, %s22
    %s23 = sphi 0, %s20
    %s24 = sphi 0, %s23
    %s40 = sphi 0, %s24
    %s44 = sphi 0, %s44
    %s46 = sphi 0, %s44
    %s47 = sphi 0, %s46
    %s61 = sphi 0, %s47
    %s67 = sphi 0, %s69
    %s70 = sphi 0, %s67
    %s71 = sphi 0, %s70
    %s87 = sphi 0, %s71
    %s93 = sphi 0, %s95
    %s96 = sphi 0, %s93
    %s97 = sphi 0, %s96
    %s113 = sphi 0, %s97
  $region4: #{conv_block_forward.2} parent=0 // loop_header_branch
    %13 = sbr.rel (%p11) target = $region8
  $region5: #{conv_block_forward.2} parent=0 // loop_body
    %s15 = ssub.s32 %s10, 1
    %s16 = ssub.s32 %s10, 2
    %s17 = sadd.s32 %s10, 1
    %s18 = ssub.s32 %s10, %s17
    %p19 = scmp.eq.s32.totalorder %s18, 0
    %s21 = sadd.s32 %s20, 1
    %s22 = scalar_select %p19, %s20, %s21
    %p25 = pneg %p19
    %p26 = scmp.eq.s32.totalorder %s10, 1
    %p27 = por %p25, %p26
    %p28 = scmp.ne.s32.totalorder %s20, %s23
    %p29 = scmp.eq.s32.totalorder %s10, 0
    %p30 = por %p28, %p29
    %p31 = scmp.ne.s32.totalorder %s20, %s23
    %p32 = scmp.eq.s32.totalorder %s15, 1
    %p33 = por %p31, %p32
    %p34 = scmp.ne.s32.totalorder %s23, %s24
    %p35 = scmp.eq.s32.totalorder %s15, 0
    %p36 = por %p34, %p35
    %p37 = scmp.ne.s32.totalorder %s23, %s24
    %p38 = scmp.eq.s32.totalorder %s16, 1
    %p39 = por %p37, %p38
    %p41 = scmp.ne.s32.totalorder %s24, %s40
    %p42 = scmp.eq.s32.totalorder %s16, 0
    %p43 = por %p41, %p42
    %s45 = sadd.s32 %s44, 1
    %p48 = scmp.eq.s32.totalorder %s10, 1
    %p49 = scmp.ne.s32.totalorder %s44, %s46
    %p50 = scmp.eq.s32.totalorder %s10, 0
    %p51 = por %p49, %p50
    %p52 = scmp.ne.s32.totalorder %s44, %s46
    %p53 = scmp.eq.s32.totalorder %s15, 1
    %p54 = por %p52, %p53
    %p55 = scmp.ne.s32.totalorder %s46, %s47
    %p56 = scmp.eq.s32.totalorder %s15, 0
    %p57 = por %p55, %p56
    %p58 = scmp.ne.s32.totalorder %s46, %s47
    %p59 = scmp.eq.s32.totalorder %s16, 1
    %p60 = por %p58, %p59
    %p62 = scmp.ne.s32.totalorder %s47, %s61
    %p63 = scmp.eq.s32.totalorder %s16, 0
    %p64 = por %p62, %p63
    %s65 = ssub.s32 %s10, %s17
    %p66 = scmp.eq.s32.totalorder %s65, 0
    %s68 = sadd.s32 %s67, 1
    %s69 = scalar_select %p66, %s67, %s68
    %p72 = pneg %p66
    %p73 = scmp.eq.s32.totalorder %s10, 1
    %p74 = por %p72, %p73
    %p75 = scmp.ne.s32.totalorder %s67, %s70
    %p76 = scmp.eq.s32.totalorder %s10, 0
    %p77 = por %p75, %p76
    %p78 = scmp.ne.s32.totalorder %s67, %s70
    %p79 = scmp.eq.s32.totalorder %s15, 1
    %p80 = por %p78, %p79
    %p81 = scmp.ne.s32.totalorder %s70, %s71
    %p82 = scmp.eq.s32.totalorder %s15, 0
    %p83 = por %p81, %p82
    %p84 = scmp.ne.s32.totalorder %s70, %s71
    %p85 = scmp.eq.s32.totalorder %s16, 1
    %p86 = por %p84, %p85
    %p88 = scmp.ne.s32.totalorder %s71, %s87
    %p89 = scmp.eq.s32.totalorder %s16, 0
    %p90 = por %p88, %p89
    %s91 = ssub.s32 %s10, %s17
    %p92 = scmp.eq.s32.totalorder %s91, 0
    %s94 = sadd.s32 %s93, 1
    %s95 = scalar_select %p92, %s93, %s94
    %p98 = pneg %p92
    %p99 = scmp.eq.s32.totalorder %s10, 1
    %p100 = por %p98, %p99
    %p101 = scmp.ne.s32.totalorder %s93, %s96
    %p102 = scmp.eq.s32.totalorder %s10, 0
    %p103 = por %p101, %p102
    %p104 = scmp.ne.s32.totalorder %s93, %s96
    %p105 = scmp.eq.s32.totalorder %s15, 1
    %p106 = por %p104, %p105
    %p107 = scmp.ne.s32.totalorder %s96, %s97
    %p108 = scmp.eq.s32.totalorder %s15, 0
    %p109 = por %p107, %p108
    %p110 = scmp.ne.s32.totalorder %s96, %s97
    %p111 = scmp.eq.s32.totalorder %s16, 1
    %p112 = por %p110, %p111
    %p114 = scmp.ne.s32.totalorder %s97, %s113
    %p115 = scmp.eq.s32.totalorder %s16, 0
    %p116 = por %p114, %p115
    %p117 = scmp.le.s32.totalorder 1, %s10
    %p118 = scmp.lt.s32.totalorder %s10, 3
    %p119 = pnand %p117, %p118
    %p120 = pneg %p119
    // Predicated region
    $region9: #{conv_block_forward.2} parent=5 // pred_check
      _
    $region10: #{conv_block_forward.2} parent=5 // pred_check_branch
      %122 = sbr.rel (%p119) target = $region12
    $region11: #{conv_block_forward.2} parent=5 // pred_region
      %s123 = ssub.s32 %s10, 1
      // Predicated region
      $region13: #{conv_block_forward.2} parent=11 // pred_check
        %p124 = pneg %p57
      $region14: #{conv_block_forward.2} parent=11 // pred_check_branch
        %126 = sbr.rel (%p124) target = $region16
      $region15: #{conv_block_forward.2} parent=11 // pred_region
        _
      $region16: #{conv_block_forward.2} parent=11 // pred_fallthru
        _
    $region12: #{conv_block_forward.2} parent=5 // pred_fallthru
      _
    %p127 = scmp.lt.s32.totalorder %s10, 2
    // Predicated region
    $region17: #{conv_block_forward.2} parent=5 // pred_check
      %p128 = pneg %p127
    $region18: #{conv_block_forward.2} parent=5 // pred_check_branch
      %130 = sbr.rel (%p128) target = $region20
    $region19: #{conv_block_forward.2} parent=5 // pred_region
      // Predicated region
      $region21: #{conv_block_forward.2} parent=19 // pred_check
        %p131 = pneg %p30
      $region22: #{conv_block_forward.2} parent=19 // pred_check_branch
        %133 = sbr.rel (%p131) target = $region24
      $region23: #{conv_block_forward.2} parent=19 // pred_region
        %s134 = smul.u32 2, %s10
        %p135 = scmp.lt.s32.totalorder %s134, 3
        %s136 = scalar_select %p135, %s134, 3
        %s137 = smul.addr %s136, 8
        %s138 = scalar_lea.vmem %s0, %s137
        %s139 = smul.u32 2, %s10
      $region24: #{conv_block_forward.2} parent=19 // pred_fallthru
        _
    $region20: #{conv_block_forward.2} parent=5 // pred_fallthru
      _
    %p140 = scmp.le.s32.totalorder 1, %s10
    %p141 = scmp.lt.s32.totalorder %s10, 3
    %p142 = pnand %p140, %p141
    %p143 = pneg %p142
    // Predicated region
    $region25: #{conv_block_forward.2} parent=5 // pred_check
      _
    $region26: #{conv_block_forward.2} parent=5 // pred_check_branch
      %145 = sbr.rel (%p142) target = $region28
    $region27: #{conv_block_forward.2} parent=5 // pred_region
      %s146 = ssub.s32 %s10, 1
      %s147 = smul.u32 2, %s15
      %p148 = scmp.lt.s32.totalorder %s147, 3
      %s149 = scalar_select %p148, %s147, 3
      %s150 = smul.addr %s149, 8
      %s151 = scalar_lea.vmem %s0, %s150
      %p152 = pneg %p36
      %p153 = pneg %p33
      %p154 = pneg %p57
      %p155 = pneg %p54
      %p156 = pneg %p83
      %p157 = pneg %p80
      %s158 = smul.u32 2, %s15
      %p159 = scmp.lt.s32.totalorder %s158, 3
      %s160 = scalar_select %p159, %s158, 3
      %s161 = smul.addr %s160, 8
      %s162 = scalar_lea.vmem %s2, %s161
      %p163 = pneg %p109
      %p164 = pneg %p106
      %p165 = scmp.lt.s32.totalorder %s15, 1
      %s166 = scalar_select %p165, %s15, 1
      %s167 = smul.addr %s166, 2
      %s168 = scalar_lea.vmem %s3, %s167
      %s169 = smul.u32 2, %s15
      %p170 = scmp.lt.s32.totalorder %s169, 3
      %s171 = scalar_select %p170, %s169, 3
      %s172 = smul.addr %s171, 8
      %s173 = scalar_lea.vmem %s0, %s172
      %s174 = smul.u32 2, %s15
      %s175 = smul.u32 2, %s15
      %p176 = scmp.lt.s32.totalorder %s175, 3
      %s177 = scalar_select %p176, %s175, 3
      %s178 = smul.addr %s177, 8
      %s179 = scalar_lea.vmem %s2, %s178
      %s180 = smul.u32 2, %s15
      %p181 = scmp.lt.s32.totalorder %s15, 1
      %s182 = scalar_select %p181, %s15, 1
      %s183 = smul.addr %s182, 2
      %s184 = scalar_lea.vmem %s3, %s183
      %v185 = vld [vmem:[%s173] sm:$0xff]
      %v186 = vld [vmem:[%s173 + $0x8] sm:$0xff]
      %v187 = vlaneseq
      %v188 = vshrl.u32 %v187, 7
      %v189 = vadd.s32 %v188, 8
      %vm190 = vcmp.lt.s32.totalorder %v188, 0
      %v191 = vsub.s32 0, %v188
      %v192 = vsel %vm190, %v191, %v188
      %v193 = vshrl.u32 %v192, 4
      %v194 = vand.u32 %v192, 15
      %v195 = vsub.s32 0, %v194
      %v196 = vsel %vm190, %v195, %v194
      %vm197 = vcmp.lt.s32.totalorder %v189, 0
      %v198 = vsub.s32 0, %v189
      %v199 = vsel %vm197, %v198, %v189
      %v200 = vshrl.u32 %v199, 4
      %v201 = vand.u32 %v199, 15
      %v202 = vsub.s32 0, %v201
      %v203 = vsel %vm197, %v202, %v201
      %vm204 = vcmp.ne.s32.totalorder %v196, 0
      %vm205 = vcmp.ne.s32.totalorder %v203, 0
      %vm206 = vcmp.lt.s32.totalorder %v196, 0
      %vm207 = vcmp.lt.s32.totalorder %v203, 0
      %vm208 = vmand %vm206, %vm204
      %vm209 = vmand %vm207, %vm205
      %v210 = vadd.s32 %v196, 16
      %v211 = vadd.s32 %v203, 16
      %v212 = vsel %vm208, %v210, %v196
      %v213 = vsel %vm209, %v211, %v203
      %vm214 = vcmp.eq.s32.totalorder %v212, 0
      %vm215 = vcmp.eq.s32.totalorder %v213, 0
      %v216 = vrot.slane %v185, 7
      %v217 = vrot.slane %v186, 7
      %vm218 = vcmp.lt.s32.totalorder %v188, 1
      %v219 = vsel %vm218, %v216, %v217
      %v220 = vsel %vm218, %v217, %v216
      %v221 = vsel %vm214, 1, 0
      %v222 = vsel %vm215, 1, 0
      %vm223 = vcmp.eq.s32.totalorder %v221, 1
      %vm224 = vcmp.eq.s32.totalorder %v222, 1
      %v225 = vsel %vm223, 0.0, %v220
      %v226 = vsel %vm224, 0.0, %v219
      %vm227 = vcmp.eq.s32.totalorder %v212, 15
      %vm228 = vcmp.eq.s32.totalorder %v213, 15
      %v229 = vrot.slane %v185, 1
      %v230 = vrot.slane %v186, 1
      %vm231 = vcmp.lt.s32.totalorder %v188, 7
      %v232 = vsel %vm231, %v229, %v230
      %v233 = vsel %vm231, %v230, %v229
      %v234 = vsel %vm227, 1, 0
      %v235 = vsel %vm228, 1, 0
      %vm236 = vcmp.eq.s32.totalorder %v234, 1
      %vm237 = vcmp.eq.s32.totalorder %v235, 1
      %v238 = vsel %vm236, 0.0, %v232
      %v239 = vsel %vm237, 0.0, %v233
      %v240 = vld [vmem:[%s1] sm:$0xff]
      %v241 = vld [vmem:[%s1 + $0x8] sm:$0xff]
      %v242 = vld [vmem:[%s1 + $0x10] sm:$0xff]
      %v243 = vld [vmem:[%s1 + $0x18] sm:$0xff]
      %v244 = vld [vmem:[%s1 + $0x20] sm:$0xff]
      %v245 = vld [vmem:[%s1 + $0x28] sm:$0xff]
      %v246 = vld [vmem:[%s1 + $0x30] sm:$0xff]
      %v247 = vld [vmem:[%s1 + $0x38] sm:$0xff]
      %s248 = scalar_lea.vmem %s1, 64
      %v249 = vld [vmem:[%s248] sm:$0xff]
      %v250 = vld [vmem:[%s248 + $0x8] sm:$0xff]
      %v251 = vld [vmem:[%s248 + $0x10] sm:$0xff]
      %v252 = vld [vmem:[%s248 + $0x18] sm:$0xff]
      %v253 = vld [vmem:[%s248 + $0x20] sm:$0xff]
      %v254 = vld [vmem:[%s248 + $0x28] sm:$0xff]
      %v255 = vld [vmem:[%s248 + $0x30] sm:$0xff]
      %v256 = vld [vmem:[%s248 + $0x38] sm:$0xff]
      %vm257 = vcmask 523264
      %v259 = vsel %vm257, %v185, 0
      %v262 = vsel %vm257, %v186, 0
      %264 = vmatprep.subr.mxu0 0.0
      %265 = vmatpush1.msra.mxu0 0.0
      %266 = vmatprep.subr.mxu0 0.0
      %267 = vmatpush1.msra.mxu0 0.0
      %268 = vmatprep.subr.mxu0 0.0
      %269 = vmatpush1.msra.mxu0 0.0
      %270 = vmatprep.subr.mxu0 0.0
      %271 = vmatpush1.msra.mxu0 0.0
      %272 = vmatprep.subr.mxu0 0.0
      %273 = vmatpush1.msra.mxu0 0.0
      %274 = vmatprep.subr.mxu0 0.0
      %275 = vmatpush1.msra.mxu0 0.0
      %276 = vmatprep.subr.mxu0 0.0
      %277 = vmatpush1.msra.mxu0 0.0
      %278 = vmatprep.subr.mxu0 0.0
      %279 = vmatpush1.msra.mxu0 0.0
      %280 = vmatprep.subr.mxu0 0.0
      %281 = vmatpush1.msra.mxu0 %v256
      %282 = vmatprep.subr.mxu0 0.0
      %283 = vmatpush1.msra.mxu0 %v255
      %284 = vmatprep.subr.mxu0 0.0
      %285 = vmatpush1.msra.mxu0 %v254
      %286 = vmatprep.subr.mxu0 0.0
      %287 = vmatpush1.msra.mxu0 %v253
      %288 = vmatprep.subr.mxu0 0.0
      %289 = vmatpush1.msra.mxu0 %v252
      %290 = vmatprep.subr.mxu0 0.0
      %291 = vmatpush1.msra.mxu0 %v251
      %292 = vmatprep.subr.mxu0 0.0
      %293 = vmatpush1.msra.mxu0 %v250
      %294 = vmatprep.subr.mxu0 0.0
      %295 = vmatpush1.msra.mxu0 %v249
      %296 = vmatprep.subr.mxu0 0.0
      %297 = vmatpush2.msra.mxu0 0.0
      %298 = vmatprep.subr.mxu0 0.0
      %299 = vmatpush2.msra.mxu0 0.0
      %300 = vmatprep.subr.mxu0 0.0
      %301 = vmatpush2.msra.mxu0 0.0
      %302 = vmatprep.subr.mxu0 0.0
      %303 = vmatpush2.msra.mxu0 0.0
      %304 = vmatprep.subr.mxu0 0.0
      %305 = vmatpush2.msra.mxu0 0.0
      %306 = vmatprep.subr.mxu0 0.0
      %307 = vmatpush2.msra.mxu0 0.0
      %308 = vmatprep.subr.mxu0 0.0
      %309 = vmatpush2.msra.mxu0 0.0
      %310 = vmatprep.subr.mxu0 0.0
      %311 = vmatpush2.msra.mxu0 0.0
      %312 = vmatprep.subr.mxu0 0.0
      %313 = vmatpush2.msra.mxu0 0.0
      %314 = vmatprep.subr.mxu0 0.0
      %315 = vmatpush2.msra.mxu0 0.0
      %316 = vmatprep.subr.mxu0 0.0
      %317 = vmatpush2.msra.mxu0 0.0
      %318 = vmatprep.subr.mxu0 0.0
      %319 = vmatpush2.msra.mxu0 0.0
      %320 = vmatprep.subr.mxu0 0.0
      %321 = vmatpush2.msra.mxu0 0.0
      %322 = vmatprep.subr.mxu0 0.0
      %323 = vmatpush2.msra.mxu0 0.0
      %324 = vmatprep.subr.mxu0 0.0
      %325 = vmatpush2.msra.mxu0 0.0
      %326 = vmatprep.subr.mxu0 0.0
      %327 = vmatpush2.msra.mxu0 0.0
      %328 = vmatprep.mubr.f32.mxu0 0.0
      %329 = vmatmul.mubr.f32.gmra.mxu0 %v259
      %v330 = vpop.f32.mrf.mxu0
      %v331 = vadd.f32 0.0, %v330
      %v332 = vpop.f32.mrf.mxu0
      %333 = vmatprep.mubr.f32.mxu0 0.0
      %334 = vmatmul.mubr.f32.gmra.mxu0 %v262
      %v335 = vpop.f32.mrf.mxu0
      %v336 = vadd.f32 0.0, %v335
      %v337 = vpop.f32.mrf.mxu0
      %338 = vdwg.mxu0
      %v340 = vsel %vm257, %v225, 0
      %v343 = vsel %vm257, %v226, 0
      %345 = vmatprep.subr.mxu0 0.0
      %346 = vmatpush1.msra.mxu0 0.0
      %347 = vmatprep.subr.mxu0 0.0
      %348 = vmatpush1.msra.mxu0 0.0
      %349 = vmatprep.subr.mxu0 0.0
      %350 = vmatpush1.msra.mxu0 0.0
      %351 = vmatprep.subr.mxu0 0.0
      %352 = vmatpush1.msra.mxu0 0.0
      %353 = vmatprep.subr.mxu0 0.0
      %354 = vmatpush1.msra.mxu0 0.0
      %355 = vmatprep.subr.mxu0 0.0
      %356 = vmatpush1.msra.mxu0 0.0
      %357 = vmatprep.subr.mxu0 0.0
      %358 = vmatpush1.msra.mxu0 0.0
      %359 = vmatprep.subr.mxu0 0.0
      %360 = vmatpush1.msra.mxu0 0.0
      %361 = vmatprep.subr.mxu0 0.0
      %362 = vmatpush1.msra.mxu0 %v247
      %363 = vmatprep.subr.mxu0 0.0
      %364 = vmatpush1.msra.mxu0 %v246
      %365 = vmatprep.subr.mxu0 0.0
      %366 = vmatpush1.msra.mxu0 %v245
      %367 = vmatprep.subr.mxu0 0.0
      %368 = vmatpush1.msra.mxu0 %v244
      %369 = vmatprep.subr.mxu0 0.0
      %370 = vmatpush1.msra.mxu0 %v243
      %371 = vmatprep.subr.mxu0 0.0
      %372 = vmatpush1.msra.mxu0 %v242
      %373 = vmatprep.subr.mxu0 0.0
      %374 = vmatpush1.msra.mxu0 %v241
      %375 = vmatprep.subr.mxu0 0.0
      %376 = vmatpush1.msra.mxu0 %v240
      %377 = vmatprep.subr.mxu0 0.0
      %378 = vmatpush2.msra.mxu0 0.0
      %379 = vmatprep.subr.mxu0 0.0
      %380 = vmatpush2.msra.mxu0 0.0
      %381 = vmatprep.subr.mxu0 0.0
      %382 = vmatpush2.msra.mxu0 0.0
      %383 = vmatprep.subr.mxu0 0.0
      %384 = vmatpush2.msra.mxu0 0.0
      %385 = vmatprep.subr.mxu0 0.0
      %386 = vmatpush2.msra.mxu0 0.0
      %387 = vmatprep.subr.mxu0 0.0
      %388 = vmatpush2.msra.mxu0 0.0
      %389 = vmatprep.subr.mxu0 0.0
      %390 = vmatpush2.msra.mxu0 0.0
      %391 = vmatprep.subr.mxu0 0.0
      %392 = vmatpush2.msra.mxu0 0.0
      %393 = vmatprep.subr.mxu0 0.0
      %394 = vmatpush2.msra.mxu0 0.0
      %395 = vmatprep.subr.mxu0 0.0
      %396 = vmatpush2.msra.mxu0 0.0
      %397 = vmatprep.subr.mxu0 0.0
      %398 = vmatpush2.msra.mxu0 0.0
      %399 = vmatprep.subr.mxu0 0.0
      %400 = vmatpush2.msra.mxu0 0.0
      %401 = vmatprep.subr.mxu0 0.0
      %402 = vmatpush2.msra.mxu0 0.0
      %403 = vmatprep.subr.mxu0 0.0
      %404 = vmatpush2.msra.mxu0 0.0
      %405 = vmatprep.subr.mxu0 0.0
      %406 = vmatpush2.msra.mxu0 0.0
      %407 = vmatprep.subr.mxu0 0.0
      %408 = vmatpush2.msra.mxu0 0.0
      %409 = vmatprep.mubr.f32.mxu0 0.0
      %410 = vmatmul.mubr.f32.gmra.mxu0 %v340
      %v411 = vpop.f32.mrf.mxu0
      %v412 = vadd.f32 %v331, %v411
      %v413 = vpop.f32.mrf.mxu0
      %414 = vmatprep.mubr.f32.mxu0 0.0
      %415 = vmatmul.mubr.f32.gmra.mxu0 %v343
      %v416 = vpop.f32.mrf.mxu0
      %v417 = vadd.f32 %v336, %v416
      %v418 = vpop.f32.mrf.mxu0
      %419 = vdwg.mxu0
      %s420 = scalar_lea.vmem %s1, 128
      %v421 = vld [vmem:[%s420] sm:$0xff]
      %v422 = vld [vmem:[%s420 + $0x8] sm:$0xff]
      %v423 = vld [vmem:[%s420 + $0x10] sm:$0xff]
      %v424 = vld [vmem:[%s420 + $0x18] sm:$0xff]
      %v425 = vld [vmem:[%s420 + $0x20] sm:$0xff]
      %v426 = vld [vmem:[%s420 + $0x28] sm:$0xff]
      %v427 = vld [vmem:[%s420 + $0x30] sm:$0xff]
      %v428 = vld [vmem:[%s420 + $0x38] sm:$0xff]
      %v430 = vsel %vm257, %v238, 0
      %v433 = vsel %vm257, %v239, 0
      %435 = vmatprep.subr.mxu0 0.0
      %436 = vmatpush1.msra.mxu0 0.0
      %437 = vmatprep.subr.mxu0 0.0
      %438 = vmatpush1.msra.mxu0 0.0
      %439 = vmatprep.subr.mxu0 0.0
      %440 = vmatpush1.msra.mxu0 0.0
      %441 = vmatprep.subr.mxu0 0.0
      %442 = vmatpush1.msra.mxu0 0.0
      %443 = vmatprep.subr.mxu0 0.0
      %444 = vmatpush1.msra.mxu0 0.0
      %445 = vmatprep.subr.mxu0 0.0
      %446 = vmatpush1.msra.mxu0 0.0
      %447 = vmatprep.subr.mxu0 0.0
      %448 = vmatpush1.msra.mxu0 0.0
      %449 = vmatprep.subr.mxu0 0.0
      %450 = vmatpush1.msra.mxu0 0.0
      %451 = vmatprep.subr.mxu0 0.0
      %452 = vmatpush1.msra.mxu0 %v428
      %453 = vmatprep.subr.mxu0 0.0
      %454 = vmatpush1.msra.mxu0 %v427
      %455 = vmatprep.subr.mxu0 0.0
      %456 = vmatpush1.msra.mxu0 %v426
      %457 = vmatprep.subr.mxu0 0.0
      %458 = vmatpush1.msra.mxu0 %v425
      %459 = vmatprep.subr.mxu0 0.0
      %460 = vmatpush1.msra.mxu0 %v424
      %461 = vmatprep.subr.mxu0 0.0
      %462 = vmatpush1.msra.mxu0 %v423
      %463 = vmatprep.subr.mxu0 0.0
      %464 = vmatpush1.msra.mxu0 %v422
      %465 = vmatprep.subr.mxu0 0.0
      %466 = vmatpush1.msra.mxu0 %v421
      %467 = vmatprep.subr.mxu0 0.0
      %468 = vmatpush2.msra.mxu0 0.0
      %469 = vmatprep.subr.mxu0 0.0
      %470 = vmatpush2.msra.mxu0 0.0
      %471 = vmatprep.subr.mxu0 0.0
      %472 = vmatpush2.msra.mxu0 0.0
      %473 = vmatprep.subr.mxu0 0.0
      %474 = vmatpush2.msra.mxu0 0.0
      %475 = vmatprep.subr.mxu0 0.0
      %476 = vmatpush2.msra.mxu0 0.0
      %477 = vmatprep.subr.mxu0 0.0
      %478 = vmatpush2.msra.mxu0 0.0
      %479 = vmatprep.subr.mxu0 0.0
      %480 = vmatpush2.msra.mxu0 0.0
      %481 = vmatprep.subr.mxu0 0.0
      %482 = vmatpush2.msra.mxu0 0.0
      %483 = vmatprep.subr.mxu0 0.0
      %484 = vmatpush2.msra.mxu0 0.0
      %485 = vmatprep.subr.mxu0 0.0
      %486 = vmatpush2.msra.mxu0 0.0
      %487 = vmatprep.subr.mxu0 0.0
      %488 = vmatpush2.msra.mxu0 0.0
      %489 = vmatprep.subr.mxu0 0.0
      %490 = vmatpush2.msra.mxu0 0.0
      %491 = vmatprep.subr.mxu0 0.0
      %492 = vmatpush2.msra.mxu0 0.0
      %493 = vmatprep.subr.mxu0 0.0
      %494 = vmatpush2.msra.mxu0 0.0
      %495 = vmatprep.subr.mxu0 0.0
      %496 = vmatpush2.msra.mxu0 0.0
      %497 = vmatprep.subr.mxu0 0.0
      %498 = vmatpush2.msra.mxu0 0.0
      %499 = vmatprep.mubr.f32.mxu0 0.0
      %500 = vmatmul.mubr.f32.gmra.mxu0 %v430
      %v501 = vpop.f32.mrf.mxu0
      %v502 = vadd.f32 0.0, %v501
      %v503 = vpop.f32.mrf.mxu0
      %504 = vmatprep.mubr.f32.mxu0 0.0
      %505 = vmatmul.mubr.f32.gmra.mxu0 %v433
      %v506 = vpop.f32.mrf.mxu0
      %v507 = vadd.f32 0.0, %v506
      %v508 = vpop.f32.mrf.mxu0
      %509 = vdwg.mxu0
      %v510 = vadd.f32 %v412, %v502
      %v511 = vadd.f32 %v417, %v507
      %512 = vst [vmem:[%s179] sm:$0xff] %v510
      %513 = vst [vmem:[%s179 + $0x8] sm:$0xff] %v511
      %v514 = vadd.f32 %v510, %v511
      %v515 = vrot.slane %v514, 4
      %v516 = vadd.f32 %v514, %v515
      %v517 = vrot.slane %v516, 2
      %v518 = vadd.f32 %v516, %v517
      %v519 = vrot.slane %v518, 1
      %v520 = vadd.f32 %v518, %v519
      %521 = vst [vmem:[%s184] sm:$0x1] %v520
      %v522 = vmul.f32 %v510, %v510
      %v523 = vmul.f32 %v511, %v511
      %v524 = vadd.f32 %v522, %v523
      %v525 = vrot.slane %v524, 4
      %v526 = vadd.f32 %v524, %v525
      %v527 = vrot.slane %v526, 2
      %v528 = vadd.f32 %v526, %v527
      %v529 = vrot.slane %v528, 1
      %v530 = vadd.f32 %v528, %v529
      %531 = vst [vmem:[%s184 + $0x1] sm:$0x1] %v530
      %s532 = smul.u32 2, %s15
      %p533 = scmp.lt.s32.totalorder %s532, 3
      %s534 = scalar_select %p533, %s532, 3
      %s535 = smul.addr %s534, 8
      %s536 = scalar_lea.vmem %s2, %s535
      %p537 = scmp.lt.s32.totalorder %s15, 1
      %s538 = scalar_select %p537, %s15, 1
      %s539 = smul.addr %s538, 2
      %s540 = scalar_lea.vmem %s3, %s539
      // Predicated region
      $region29: #{conv_block_forward.2} parent=27 // pred_check
        %p541 = pneg %p80
      $region30: #{conv_block_forward.2} parent=27 // pred_check_branch
        %543 = sbr.rel (%p541) target = $region32
      $region31: #{conv_block_forward.2} parent=27 // pred_region
        %s544 = smul.u32 2, %s15
      $region32: #{conv_block_forward.2} parent=27 // pred_fallthru
        _
      // Predicated region
      $region33: #{conv_block_forward.2} parent=27 // pred_check
        %p545 = pneg %p106
      $region34: #{conv_block_forward.2} parent=27 // pred_check_branch
        %547 = sbr.rel (%p545) target = $region36
      $region35: #{conv_block_forward.2} parent=27 // pred_region
        _
      $region36: #{conv_block_forward.2} parent=27 // pred_fallthru
        _
    $region28: #{conv_block_forward.2} parent=5 // pred_fallthru
      _
    %p548 = scmp.le.s32.totalorder 2, %s10
    // Predicated region
    $region37: #{conv_block_forward.2} parent=5 // pred_check
      %p549 = pneg %p548
    $region38: #{conv_block_forward.2} parent=5 // pred_check_branch
      %551 = sbr.rel (%p549) target = $region40
    $region39: #{conv_block_forward.2} parent=5 // pred_region
      %s552 = ssub.s32 %s10, 2
      // Predicated region
      $region41: #{conv_block_forward.2} parent=39 // pred_check
        %p553 = pneg %p86
      $region42: #{conv_block_forward.2} parent=39 // pred_check_branch
        %555 = sbr.rel (%p553) target = $region44
      $region43: #{conv_block_forward.2} parent=39 // pred_region
        %s556 = smul.u32 2, %s16
        %p557 = scmp.lt.s32.totalorder %s556, 3
        %s558 = scalar_select %p557, %s556, 3
        %s559 = smul.addr %s558, 8
        %s560 = scalar_lea.vmem %s2, %s559
      $region44: #{conv_block_forward.2} parent=39 // pred_fallthru
        _
      // Predicated region
      $region45: #{conv_block_forward.2} parent=39 // pred_check
        %p561 = pneg %p112
      $region46: #{conv_block_forward.2} parent=39 // pred_check_branch
        %563 = sbr.rel (%p561) target = $region48
      $region47: #{conv_block_forward.2} parent=39 // pred_region
        %p564 = scmp.lt.s32.totalorder %s16, 1
        %s565 = scalar_select %p564, %s16, 1
        %s566 = smul.addr %s565, 2
        %s567 = scalar_lea.vmem %s3, %s566
      $region48: #{conv_block_forward.2} parent=39 // pred_fallthru
        _
    $region40: #{conv_block_forward.2} parent=5 // pred_fallthru
      _
  $region6: #{conv_block_forward.2} parent=0 // loop_footer
    %s14 = sadd.s32 1, %s10
  $region7: #{conv_block_forward.2} parent=0 // loop_footer_branch
    %9 = sbr.rel target = $region3
  $region8: #{conv_block_forward.2} parent=0 // loop_exit
    _

// kernel: conv_block_forward.3
$region0: #{conv_block_forward.3}
  #allocation0 [shape = 'u32[]', space=smem, size = 0x4, offset = 0x4, fixed_abs, tag = 'smem constant byte address 0x4 - core index']
  #allocation1 [shape = 'u32[144,128]{1,0:T(1,128)}', space=vmem, size = 0x12000, scoped, tag = 'internal scratch']
  %s0 = inlined_call_operand.vmem [shape: f32[32,128], index: 0, kind: input, shape index: {}]
  %s1 = inlined_call_operand.vmem [shape: f32[1,128], index: 1, kind: input, shape index: {}]
  %s2 = inlined_call_operand.vmem [shape: f32[1,128], index: 2, kind: input, shape index: {}]
  %s3 = inlined_call_operand.vmem [shape: f32[3,128,128], index: 3, kind: input, shape index: {}]
  %s4 = inlined_call_operand.vmem [shape: f32[32,128], index: 4, kind: output, shape index: {0}]
  %s5 = inlined_call_operand.vmem [shape: f32[2,2,128], index: 5, kind: output, shape index: {1}]
  %6 = xla_tuple %s4, %s5
  %s7 = sld [smem:[#allocation0]]
  $region57: #{conv_block_forward.3} parent=0
    _
  %s9 = ssub.s32 1, %s7
  %s10 = scalar_select 0, %s9, %s7
  loop: start=0, step=1, limit=4
  $region2: #{conv_block_forward.3} parent=0 // loop_pre_header
    _
  $region3: #{conv_block_forward.3} parent=0 // loop_header
    %s12 = sphi 0, %s16
    %p13 = scmp.ge.s32.totalorder %s12, 4
    %s22 = sphi 0, %s24
    %s25 = sphi 0, %s22
    %s26 = sphi 0, %s25
    %s42 = sphi 0, %s26
    %s46 = sphi 0, %s46
    %s48 = sphi 0, %s46
    %s49 = sphi 0, %s48
    %s63 = sphi 0, %s49
    %s67 = sphi 0, %s67
    %s69 = sphi 0, %s67
    %s70 = sphi 0, %s69
    %s84 = sphi 0, %s70
    %s88 = sphi 0, %s88
    %s90 = sphi 0, %s88
    %s91 = sphi 0, %s90
    %s105 = sphi 0, %s91
    %s111 = sphi 0, %s113
    %s114 = sphi 0, %s111
    %s115 = sphi 0, %s114
    %s131 = sphi 0, %s115
    %s137 = sphi 0, %s139
    %s140 = sphi 0, %s137
    %s141 = sphi 0, %s140
    %s157 = sphi 0, %s141
  $region4: #{conv_block_forward.3} parent=0 // loop_header_branch
    %15 = sbr.rel (%p13) target = $region8
  $region5: #{conv_block_forward.3} parent=0 // loop_body
    %s17 = ssub.s32 %s12, 1
    %s18 = ssub.s32 %s12, 2
    %s19 = sadd.s32 %s12, 1
    %s20 = ssub.s32 %s12, %s19
    %p21 = scmp.eq.s32.totalorder %s20, 0
    %s23 = sadd.s32 %s22, 1
    %s24 = scalar_select %p21, %s22, %s23
    %p27 = pneg %p21
    %p28 = scmp.eq.s32.totalorder %s12, 1
    %p29 = por %p27, %p28
    %p30 = scmp.ne.s32.totalorder %s22, %s25
    %p31 = scmp.eq.s32.totalorder %s12, 0
    %p32 = por %p30, %p31
    %p33 = scmp.ne.s32.totalorder %s22, %s25
    %p34 = scmp.eq.s32.totalorder %s17, 1
    %p35 = por %p33, %p34
    %p36 = scmp.ne.s32.totalorder %s25, %s26
    %p37 = scmp.eq.s32.totalorder %s17, 0
    %p38 = por %p36, %p37
    %p39 = scmp.ne.s32.totalorder %s25, %s26
    %p40 = scmp.eq.s32.totalorder %s18, 1
    %p41 = por %p39, %p40
    %p43 = scmp.ne.s32.totalorder %s26, %s42
    %p44 = scmp.eq.s32.totalorder %s18, 0
    %p45 = por %p43, %p44
    %s47 = sadd.s32 %s46, 1
    %p50 = scmp.eq.s32.totalorder %s12, 1
    %p51 = scmp.ne.s32.totalorder %s46, %s48
    %p52 = scmp.eq.s32.totalorder %s12, 0
    %p53 = por %p51, %p52
    %p54 = scmp.ne.s32.totalorder %s46, %s48
    %p55 = scmp.eq.s32.totalorder %s17, 1
    %p56 = por %p54, %p55
    %p57 = scmp.ne.s32.totalorder %s48, %s49
    %p58 = scmp.eq.s32.totalorder %s17, 0
    %p59 = por %p57, %p58
    %p60 = scmp.ne.s32.totalorder %s48, %s49
    %p61 = scmp.eq.s32.totalorder %s18, 1
    %p62 = por %p60, %p61
    %p64 = scmp.ne.s32.totalorder %s49, %s63
    %p65 = scmp.eq.s32.totalorder %s18, 0
    %p66 = por %p64, %p65
    %s68 = sadd.s32 %s67, 1
    %p71 = scmp.eq.s32.totalorder %s12, 1
    %p72 = scmp.ne.s32.totalorder %s67, %s69
    %p73 = scmp.eq.s32.totalorder %s12, 0
    %p74 = por %p72, %p73
    %p75 = scmp.ne.s32.totalorder %s67, %s69
    %p76 = scmp.eq.s32.totalorder %s17, 1
    %p77 = por %p75, %p76
    %p78 = scmp.ne.s32.totalorder %s69, %s70
    %p79 = scmp.eq.s32.totalorder %s17, 0
    %p80 = por %p78, %p79
    %p81 = scmp.ne.s32.totalorder %s69, %s70
    %p82 = scmp.eq.s32.totalorder %s18, 1
    %p83 = por %p81, %p82
    %p85 = scmp.ne.s32.totalorder %s70, %s84
    %p86 = scmp.eq.s32.totalorder %s18, 0
    %p87 = por %p85, %p86
    %s89 = sadd.s32 %s88, 1
    %p92 = scmp.eq.s32.totalorder %s12, 1
    %p93 = scmp.ne.s32.totalorder %s88, %s90
    %p94 = scmp.eq.s32.totalorder %s12, 0
    %p95 = por %p93, %p94
    %p96 = scmp.ne.s32.totalorder %s88, %s90
    %p97 = scmp.eq.s32.totalorder %s17, 1
    %p98 = por %p96, %p97
    %p99 = scmp.ne.s32.totalorder %s90, %s91
    %p100 = scmp.eq.s32.totalorder %s17, 0
    %p101 = por %p99, %p100
    %p102 = scmp.ne.s32.totalorder %s90, %s91
    %p103 = scmp.eq.s32.totalorder %s18, 1
    %p104 = por %p102, %p103
    %p106 = scmp.ne.s32.totalorder %s91, %s105
    %p107 = scmp.eq.s32.totalorder %s18, 0
    %p108 = por %p106, %p107
    %s109 = ssub.s32 %s12, %s19
    %p110 = scmp.eq.s32.totalorder %s109, 0
    %s112 = sadd.s32 %s111, 1
    %s113 = scalar_select %p110, %s111, %s112
    %p116 = pneg %p110
    %p117 = scmp.eq.s32.totalorder %s12, 1
    %p118 = por %p116, %p117
    %p119 = scmp.ne.s32.totalorder %s111, %s114
    %p120 = scmp.eq.s32.totalorder %s12, 0
    %p121 = por %p119, %p120
    %p122 = scmp.ne.s32.totalorder %s111, %s114
    %p123 = scmp.eq.s32.totalorder %s17, 1
    %p124 = por %p122, %p123
    %p125 = scmp.ne.s32.totalorder %s114, %s115
    %p126 = scmp.eq.s32.totalorder %s17, 0
    %p127 = por %p125, %p126
    %p128 = scmp.ne.s32.totalorder %s114, %s115
    %p129 = scmp.eq.s32.totalorder %s18, 1
    %p130 = por %p128, %p129
    %p132 = scmp.ne.s32.totalorder %s115, %s131
    %p133 = scmp.eq.s32.totalorder %s18, 0
    %p134 = por %p132, %p133
    %s135 = ssub.s32 %s12, %s19
    %p136 = scmp.eq.s32.totalorder %s135, 0
    %s138 = sadd.s32 %s137, 1
    %s139 = scalar_select %p136, %s137, %s138
    %p142 = pneg %p136
    %p143 = scmp.eq.s32.totalorder %s12, 1
    %p144 = por %p142, %p143
    %p145 = scmp.ne.s32.totalorder %s137, %s140
    %p146 = scmp.eq.s32.totalorder %s12, 0
    %p147 = por %p145, %p146
    %p148 = scmp.ne.s32.totalorder %s137, %s140
    %p149 = scmp.eq.s32.totalorder %s17, 1
    %p150 = por %p148, %p149
    %p151 = scmp.ne.s32.totalorder %s140, %s141
    %p152 = scmp.eq.s32.totalorder %s17, 0
    %p153 = por %p151, %p152
    %p154 = scmp.ne.s32.totalorder %s140, %s141
    %p155 = scmp.eq.s32.totalorder %s18, 1
    %p156 = por %p154, %p155
    %p158 = scmp.ne.s32.totalorder %s141, %s157
    %p159 = scmp.eq.s32.totalorder %s18, 0
    %p160 = por %p158, %p159
    %p161 = scmp.le.s32.totalorder 1, %s12
    %p162 = scmp.lt.s32.totalorder %s12, 3
    %p163 = pnand %p161, %p162
    %p164 = pneg %p163
    // Predicated region
    $region9: #{conv_block_forward.3} parent=5 // pred_check
      _
    $region10: #{conv_block_forward.3} parent=5 // pred_check_branch
      %166 = sbr.rel (%p163) target = $region12
    $region11: #{conv_block_forward.3} parent=5 // pred_region
      %s167 = ssub.s32 %s12, 1
      // Predicated region
      $region13: #{conv_block_forward.3} parent=11 // pred_check
        %p168 = pneg %p59
      $region14: #{conv_block_forward.3} parent=11 // pred_check_branch
        %170 = sbr.rel (%p168) target = $region16
      $region15: #{conv_block_forward.3} parent=11 // pred_region
        _
      $region16: #{conv_block_forward.3} parent=11 // pred_fallthru
        _
      // Predicated region
      $region17: #{conv_block_forward.3} parent=11 // pred_check
        %p171 = pneg %p80
      $region18: #{conv_block_forward.3} parent=11 // pred_check_branch
        %173 = sbr.rel (%p171) target = $region20
      $region19: #{conv_block_forward.3} parent=11 // pred_region
        _
      $region20: #{conv_block_forward.3} parent=11 // pred_fallthru
        _
      // Predicated region
      $region21: #{conv_block_forward.3} parent=11 // pred_check
        %p174 = pneg %p101
      $region22: #{conv_block_forward.3} parent=11 // pred_check_branch
        %176 = sbr.rel (%p174) target = $region24
      $region23: #{conv_block_forward.3} parent=11 // pred_region
        _
      $region24: #{conv_block_forward.3} parent=11 // pred_fallthru
        _
    $region12: #{conv_block_forward.3} parent=5 // pred_fallthru
      _
    %p177 = scmp.lt.s32.totalorder %s12, 2
    // Predicated region
    $region25: #{conv_block_forward.3} parent=5 // pred_check
      %p178 = pneg %p177
    $region26: #{conv_block_forward.3} parent=5 // pred_check_branch
      %180 = sbr.rel (%p178) target = $region28
    $region27: #{conv_block_forward.3} parent=5 // pred_region
      // Predicated region
      $region29: #{conv_block_forward.3} parent=27 // pred_check
        %p181 = pneg %p32
      $region30: #{conv_block_forward.3} parent=27 // pred_check_branch
        %183 = sbr.rel (%p181) target = $region32
      $region31: #{conv_block_forward.3} parent=27 // pred_region
        %s184 = smul.u32 2, %s12
        %p185 = scmp.lt.s32.totalorder %s184, 3
        %s186 = scalar_select %p185, %s184, 3
        %s187 = smul.addr %s186, 8
        %s188 = scalar_lea.vmem %s0, %s187
        %s189 = smul.u32 2, %s12
      $region32: #{conv_block_forward.3} parent=27 // pred_fallthru
        _
    $region28: #{conv_block_forward.3} parent=5 // pred_fallthru
      _
    %p190 = scmp.le.s32.totalorder 1, %s12
    %p191 = scmp.lt.s32.totalorder %s12, 3
    %p192 = pnand %p190, %p191
    %p193 = pneg %p192
    // Predicated region
    $region33: #{conv_block_forward.3} parent=5 // pred_check
      _
    $region34: #{conv_block_forward.3} parent=5 // pred_check_branch
      %195 = sbr.rel (%p192) target = $region36
    $region35: #{conv_block_forward.3} parent=5 // pred_region
      %s196 = ssub.s32 %s12, 1
      %s197 = smul.u32 2, %s17
      %p198 = scmp.lt.s32.totalorder %s197, 3
      %s199 = scalar_select %p198, %s197, 3
      %s200 = smul.addr %s199, 8
      %s201 = scalar_lea.vmem %s0, %s200
      %p202 = pneg %p38
      %p203 = pneg %p35
      %p204 = pneg %p59
      %p205 = pneg %p56
      %p206 = pneg %p80
      %p207 = pneg %p77
      %p208 = pneg %p101
      %p209 = pneg %p98
      %p210 = pneg %p127
      %p211 = pneg %p124
      %s212 = smul.u32 2, %s17
      %p213 = scmp.lt.s32.totalorder %s212, 3
      %s214 = scalar_select %p213, %s212, 3
      %s215 = smul.addr %s214, 8
      %s216 = scalar_lea.vmem %s4, %s215
      %p217 = pneg %p153
      %p218 = pneg %p150
      %p219 = scmp.lt.s32.totalorder %s17, 1
      %s220 = scalar_select %p219, %s17, 1
      %s221 = smul.addr %s220, 2
      %s222 = scalar_lea.vmem %s5, %s221
      %s223 = smul.u32 2, %s17
      %p224 = scmp.lt.s32.totalorder %s223, 3
      %s225 = scalar_select %p224, %s223, 3
      %s226 = smul.addr %s225, 8
      %s227 = scalar_lea.vmem %s0, %s226
      %s228 = smul.u32 2, %s17
      %s229 = smul.u32 2, %s17
      %p230 = scmp.lt.s32.totalorder %s229, 3
      %s231 = scalar_select %p230, %s229, 3
      %s232 = smul.addr %s231, 8
      %s233 = scalar_lea.vmem %s4, %s232
      %s234 = smul.u32 2, %s17
      %p235 = scmp.lt.s32.totalorder %s17, 1
      %s236 = scalar_select %p235, %s17, 1
      %s237 = smul.addr %s236, 2
      %s238 = scalar_lea.vmem %s5, %s237
      %v239 = vld [vmem:[%s227] sm:$0xff]
      %v240 = vld [vmem:[%s227 + $0x8] sm:$0xff]
      %v241 = vld [vmem:[%s1] sm:$0x1]
      %v243 = vlaneseq
      %v244 = vshrl.u32 %v243, 7
      %v245 = vsub.s32 0, %v244
      %v246 = vrot.slane %v241, %v245
      %v248 = vmul.f32 %v239, %v246
      %v249 = vmul.f32 %v240, %v246
      %v250 = vld [vmem:[%s2] sm:$0x1]
      %v252 = vlaneseq
      %v253 = vshrl.u32 %v252, 7
      %v254 = vsub.s32 0, %v253
      %v255 = vrot.slane %v250, %v254
      %v257 = vadd.f32 %v248, %v255
      %v258 = vadd.f32 %v249, %v255
      %v259 = vmax.f32 %v257, 0.0
      %v260 = vmax.f32 %v258, 0.0
      %v261 = vlaneseq
      %v262 = vshrl.u32 %v261, 7
      %v263 = vadd.s32 %v262, 8
      %vm264 = vcmp.lt.s32.totalorder %v262, 0
      %v265 = vsub.s32 0, %v262
      %v266 = vsel %vm264, %v265, %v262
      %v267 = vshrl.u32 %v266, 4
      %v268 = vand.u32 %v266, 15
      %v269 = vsub.s32 0, %v268
      %v270 = vsel %vm264, %v269, %v268
      %vm271 = vcmp.lt.s32.totalorder %v263, 0
      %v272 = vsub.s32 0, %v263
      %v273 = vsel %vm271, %v272, %v263
      %v274 = vshrl.u32 %v273, 4
      %v275 = vand.u32 %v273, 15
      %v276 = vsub.s32 0, %v275
      %v277 = vsel %vm271, %v276, %v275
      %vm278 = vcmp.ne.s32.totalorder %v270, 0
      %vm279 = vcmp.ne.s32.totalorder %v277, 0
      %vm280 = vcmp.lt.s32.totalorder %v270, 0
      %vm281 = vcmp.lt.s32.totalorder %v277, 0
      %vm282 = vmand %vm280, %vm278
      %vm283 = vmand %vm281, %vm279
      %v284 = vadd.s32 %v270, 16
      %v285 = vadd.s32 %v277, 16
      %v286 = vsel %vm282, %v284, %v270
      %v287 = vsel %vm283, %v285, %v277
      %vm288 = vcmp.eq.s32.totalorder %v286, 0
      %vm289 = vcmp.eq.s32.totalorder %v287, 0
      %v290 = vrot.slane %v259, 7
      %v291 = vrot.slane %v260, 7
      %vm292 = vcmp.lt.s32.totalorder %v262, 1
      %v293 = vsel %vm292, %v290, %v291
      %v294 = vsel %vm292, %v291, %v290
      %v295 = vsel %vm288, 1, 0
      %v296 = vsel %vm289, 1, 0
      %vm297 = vcmp.eq.s32.totalorder %v295, 1
      %vm298 = vcmp.eq.s32.totalorder %v296, 1
      %v299 = vsel %vm297, 0.0, %v294
      %v300 = vsel %vm298, 0.0, %v293
      %vm301 = vcmp.eq.s32.totalorder %v286, 15
      %vm302 = vcmp.eq.s32.totalorder %v287, 15
      %v303 = vrot.slane %v259, 1
      %v304 = vrot.slane %v260, 1
      %vm305 = vcmp.lt.s32.totalorder %v262, 7
      %v306 = vsel %vm305, %v303, %v304
      %v307 = vsel %vm305, %v304, %v303
      %v308 = vsel %vm301, 1, 0
      %v309 = vsel %vm302, 1, 0
      %vm310 = vcmp.eq.s32.totalorder %v308, 1
      %vm311 = vcmp.eq.s32.totalorder %v309, 1
      %v312 = vsel %vm310, 0.0, %v306
      %v313 = vsel %vm311, 0.0, %v307
      %v314 = vld [vmem:[%s3] sm:$0xff]
      %v315 = vld [vmem:[%s3 + $0x8] sm:$0xff]
      %v316 = vld [vmem:[%s3 + $0x10] sm:$0xff]
      %v317 = vld [vmem:[%s3 + $0x18] sm:$0xff]
      %v318 = vld [vmem:[%s3 + $0x20] sm:$0xff]
      %v319 = vld [vmem:[%s3 + $0x28] sm:$0xff]
      %v320 = vld [vmem:[%s3 + $0x30] sm:$0xff]
      %v321 = vld [vmem:[%s3 + $0x38] sm:$0xff]
      %v322 = vld [vmem:[%s3 + $0x40] sm:$0xff]
      %v323 = vld [vmem:[%s3 + $0x48] sm:$0xff]
      %v324 = vld [vmem:[%s3 + $0x50] sm:$0xff]
      %v325 = vld [vmem:[%s3 + $0x58] sm:$0xff]
      %v326 = vld [vmem:[%s3 + $0x60] sm:$0xff]
      %v327 = vld [vmem:[%s3 + $0x68] sm:$0xff]
      %v328 = vld [vmem:[%s3 + $0x70] sm:$0xff]
      %v329 = vld [vmem:[%s3 + $0x78] sm:$0xff]
      %s330 = scalar_lea.vmem %s3, 128
      %v331 = vld [vmem:[%s330] sm:$0xff]
      %v332 = vld [vmem:[%s330 + $0x8] sm:$0xff]
      %v333 = vld [vmem:[%s330 + $0x10] sm:$0xff]
      %v334 = vld [vmem:[%s330 + $0x18] sm:$0xff]
      %v335 = vld [vmem:[%s330 + $0x20] sm:$0xff]
      %v336 = vld [vmem:[%s330 + $0x28] sm:$0xff]
      %v337 = vld [vmem:[%s330 + $0x30] sm:$0xff]
      %v338 = vld [vmem:[%s330 + $0x38] sm:$0xff]
      %v339 = vld [vmem:[%s330 + $0x40] sm:$0xff]
      %v340 = vld [vmem:[%s330 + $0x48] sm:$0xff]
      %v341 = vld [vmem:[%s330 + $0x50] sm:$0xff]
      %v342 = vld [vmem:[%s330 + $0x58] sm:$0xff]
      %v343 = vld [vmem:[%s330 + $0x60] sm:$0xff]
      %v344 = vld [vmem:[%s330 + $0x68] sm:$0xff]
      %v345 = vld [vmem:[%s330 + $0x70] sm:$0xff]
      %v346 = vld [vmem:[%s330 + $0x78] sm:$0xff]
      %347 = vmatprep.subr.mxu0 0.0
      %348 = vmatpush1.msra.mxu0 %v346
      %349 = vmatprep.subr.mxu0 0.0
      %350 = vmatpush1.msra.mxu0 %v345
      %351 = vmatprep.subr.mxu0 0.0
      %352 = vmatpush1.msra.mxu0 %v344
      %353 = vmatprep.subr.mxu0 0.0
      %354 = vmatpush1.msra.mxu0 %v343
      %355 = vmatprep.subr.mxu0 0.0
      %356 = vmatpush1.msra.mxu0 %v342
      %357 = vmatprep.subr.mxu0 0.0
      %358 = vmatpush1.msra.mxu0 %v341
      %359 = vmatprep.subr.mxu0 0.0
      %360 = vmatpush1.msra.mxu0 %v340
      %361 = vmatprep.subr.mxu0 0.0
      %362 = vmatpush1.msra.mxu0 %v339
      %363 = vmatprep.subr.mxu0 0.0
      %364 = vmatpush1.msra.mxu0 %v338
      %365 = vmatprep.subr.mxu0 0.0
      %366 = vmatpush1.msra.mxu0 %v337
      %367 = vmatprep.subr.mxu0 0.0
      %368 = vmatpush1.msra.mxu0 %v336
      %369 = vmatprep.subr.mxu0 0.0
      %370 = vmatpush1.msra.mxu0 %v335
      %371 = vmatprep.subr.mxu0 0.0
      %372 = vmatpush1.msra.mxu0 %v334
      %373 = vmatprep.subr.mxu0 0.0
      %374 = vmatpush1.msra.mxu0 %v333
      %375 = vmatprep.subr.mxu0 0.0
      %376 = vmatpush1.msra.mxu0 %v332
      %377 = vmatprep.subr.mxu0 0.0
      %378 = vmatpush1.msra.mxu0 %v331
      %379 = vmatprep.subr.mxu0 0.0
      %380 = vmatpush2.msra.mxu0 0.0
      %381 = vmatprep.subr.mxu0 0.0
      %382 = vmatpush2.msra.mxu0 0.0
      %383 = vmatprep.subr.mxu0 0.0
      %384 = vmatpush2.msra.mxu0 0.0
      %385 = vmatprep.subr.mxu0 0.0
      %386 = vmatpush2.msra.mxu0 0.0
      %387 = vmatprep.subr.mxu0 0.0
      %388 = vmatpush2.msra.mxu0 0.0
      %389 = vmatprep.subr.mxu0 0.0
      %390 = vmatpush2.msra.mxu0 0.0
      %391 = vmatprep.subr.mxu0 0.0
      %392 = vmatpush2.msra.mxu0 0.0
      %393 = vmatprep.subr.mxu0 0.0
      %394 = vmatpush2.msra.mxu0 0.0
      %395 = vmatprep.subr.mxu0 0.0
      %396 = vmatpush2.msra.mxu0 0.0
      %397 = vmatprep.subr.mxu0 0.0
      %398 = vmatpush2.msra.mxu0 0.0
      %399 = vmatprep.subr.mxu0 0.0
      %400 = vmatpush2.msra.mxu0 0.0
      %401 = vmatprep.subr.mxu0 0.0
      %402 = vmatpush2.msra.mxu0 0.0
      %403 = vmatprep.subr.mxu0 0.0
      %404 = vmatpush2.msra.mxu0 0.0
      %405 = vmatprep.subr.mxu0 0.0
      %406 = vmatpush2.msra.mxu0 0.0
      %407 = vmatprep.subr.mxu0 0.0
      %408 = vmatpush2.msra.mxu0 0.0
      %409 = vmatprep.subr.mxu0 0.0
      %410 = vmatpush2.msra.mxu0 0.0
      %411 = vmatprep.mubr.f32.mxu0 0.0
      %412 = vmatmul.mubr.f32.gmra.mxu0 %v259
      %v413 = vpop.f32.mrf.mxu0
      %v414 = vadd.f32 0.0, %v413
      %v415 = vpop.f32.mrf.mxu0
      %416 = vmatprep.mubr.f32.mxu0 0.0
      %417 = vmatmul.mubr.f32.gmra.mxu0 %v260
      %v418 = vpop.f32.mrf.mxu0
      %v419 = vadd.f32 0.0, %v418
      %v420 = vpop.f32.mrf.mxu0
      %421 = vdwg.mxu0
      %422 = vmatprep.subr.mxu0 0.0
      %423 = vmatpush1.msra.mxu0 %v329
      %424 = vmatprep.subr.mxu0 0.0
      %425 = vmatpush1.msra.mxu0 %v328
      %426 = vmatprep.subr.mxu0 0.0
      %427 = vmatpush1.msra.mxu0 %v327
      %428 = vmatprep.subr.mxu0 0.0
      %429 = vmatpush1.msra.mxu0 %v326
      %430 = vmatprep.subr.mxu0 0.0
      %431 = vmatpush1.msra.mxu0 %v325
      %432 = vmatprep.subr.mxu0 0.0
      %433 = vmatpush1.msra.mxu0 %v324
      %434 = vmatprep.subr.mxu0 0.0
      %435 = vmatpush1.msra.mxu0 %v323
      %436 = vmatprep.subr.mxu0 0.0
      %437 = vmatpush1.msra.mxu0 %v322
      %438 = vmatprep.subr.mxu0 0.0
      %439 = vmatpush1.msra.mxu0 %v321
      %440 = vmatprep.subr.mxu0 0.0
      %441 = vmatpush1.msra.mxu0 %v320
      %442 = vmatprep.subr.mxu0 0.0
      %443 = vmatpush1.msra.mxu0 %v319
      %444 = vmatprep.subr.mxu0 0.0
      %445 = vmatpush1.msra.mxu0 %v318
      %446 = vmatprep.subr.mxu0 0.0
      %447 = vmatpush1.msra.mxu0 %v317
      %448 = vmatprep.subr.mxu0 0.0
      %449 = vmatpush1.msra.mxu0 %v316
      %450 = vmatprep.subr.mxu0 0.0
      %451 = vmatpush1.msra.mxu0 %v315
      %452 = vmatprep.subr.mxu0 0.0
      %453 = vmatpush1.msra.mxu0 %v314
      %454 = vmatprep.subr.mxu0 0.0
      %455 = vmatpush2.msra.mxu0 0.0
      %456 = vmatprep.subr.mxu0 0.0
      %457 = vmatpush2.msra.mxu0 0.0
      %458 = vmatprep.subr.mxu0 0.0
      %459 = vmatpush2.msra.mxu0 0.0
      %460 = vmatprep.subr.mxu0 0.0
      %461 = vmatpush2.msra.mxu0 0.0
      %462 = vmatprep.subr.mxu0 0.0
      %463 = vmatpush2.msra.mxu0 0.0
      %464 = vmatprep.subr.mxu0 0.0
      %465 = vmatpush2.msra.mxu0 0.0
      %466 = vmatprep.subr.mxu0 0.0
      %467 = vmatpush2.msra.mxu0 0.0
      %468 = vmatprep.subr.mxu0 0.0
      %469 = vmatpush2.msra.mxu0 0.0
      %470 = vmatprep.subr.mxu0 0.0
      %471 = vmatpush2.msra.mxu0 0.0
      %472 = vmatprep.subr.mxu0 0.0
      %473 = vmatpush2.msra.mxu0 0.0
      %474 = vmatprep.subr.mxu0 0.0
      %475 = vmatpush2.msra.mxu0 0.0
      %476 = vmatprep.subr.mxu0 0.0
      %477 = vmatpush2.msra.mxu0 0.0
      %478 = vmatprep.subr.mxu0 0.0
      %479 = vmatpush2.msra.mxu0 0.0
      %480 = vmatprep.subr.mxu0 0.0
      %481 = vmatpush2.msra.mxu0 0.0
      %482 = vmatprep.subr.mxu0 0.0
      %483 = vmatpush2.msra.mxu0 0.0
      %484 = vmatprep.subr.mxu0 0.0
      %485 = vmatpush2.msra.mxu0 0.0
      %486 = vmatprep.mubr.f32.mxu0 0.0
      %487 = vmatmul.mubr.f32.gmra.mxu0 %v299
      %v488 = vpop.f32.mrf.mxu0
      %v489 = vadd.f32 %v414, %v488
      %v490 = vpop.f32.mrf.mxu0
      %491 = vmatprep.mubr.f32.mxu0 0.0
      %492 = vmatmul.mubr.f32.gmra.mxu0 %v300
      %v493 = vpop.f32.mrf.mxu0
      %v494 = vadd.f32 %v419, %v493
      %v495 = vpop.f32.mrf.mxu0
      %496 = vdwg.mxu0
      %s497 = scalar_lea.vmem %s3, 256
      %v498 = vld [vmem:[%s497] sm:$0xff]
      %v499 = vld [vmem:[%s497 + $0x8] sm:$0xff]
      %v500 = vld [vmem:[%s497 + $0x10] sm:$0xff]
      %v501 = vld [vmem:[%s497 + $0x18] sm:$0xff]
      %v502 = vld [vmem:[%s497 + $0x20] sm:$0xff]
      %v503 = vld [vmem:[%s497 + $0x28] sm:$0xff]
      %v504 = vld [vmem:[%s497 + $0x30] sm:$0xff]
      %v505 = vld [vmem:[%s497 + $0x38] sm:$0xff]
      %v506 = vld [vmem:[%s497 + $0x40] sm:$0xff]
      %v507 = vld [vmem:[%s497 + $0x48] sm:$0xff]
      %v508 = vld [vmem:[%s497 + $0x50] sm:$0xff]
      %v509 = vld [vmem:[%s497 + $0x58] sm:$0xff]
      %v510 = vld [vmem:[%s497 + $0x60] sm:$0xff]
      %v511 = vld [vmem:[%s497 + $0x68] sm:$0xff]
      %v512 = vld [vmem:[%s497 + $0x70] sm:$0xff]
      %v513 = vld [vmem:[%s497 + $0x78] sm:$0xff]
      %514 = vmatprep.subr.mxu0 0.0
      %515 = vmatpush1.msra.mxu0 %v513
      %516 = vmatprep.subr.mxu0 0.0
      %517 = vmatpush1.msra.mxu0 %v512
      %518 = vmatprep.subr.mxu0 0.0
      %519 = vmatpush1.msra.mxu0 %v511
      %520 = vmatprep.subr.mxu0 0.0
      %521 = vmatpush1.msra.mxu0 %v510
      %522 = vmatprep.subr.mxu0 0.0
      %523 = vmatpush1.msra.mxu0 %v509
      %524 = vmatprep.subr.mxu0 0.0
      %525 = vmatpush1.msra.mxu0 %v508
      %526 = vmatprep.subr.mxu0 0.0
      %527 = vmatpush1.msra.mxu0 %v507
      %528 = vmatprep.subr.mxu0 0.0
      %529 = vmatpush1.msra.mxu0 %v506
      %530 = vmatprep.subr.mxu0 0.0
      %531 = vmatpush1.msra.mxu0 %v505
      %532 = vmatprep.subr.mxu0 0.0
      %533 = vmatpush1.msra.mxu0 %v504
      %534 = vmatprep.subr.mxu0 0.0
      %535 = vmatpush1.msra.mxu0 %v503
      %536 = vmatprep.subr.mxu0 0.0
      %537 = vmatpush1.msra.mxu0 %v502
      %538 = vmatprep.subr.mxu0 0.0
      %539 = vmatpush1.msra.mxu0 %v501
      %540 = vmatprep.subr.mxu0 0.0
      %541 = vmatpush1.msra.mxu0 %v500
      %542 = vmatprep.subr.mxu0 0.0
      %543 = vmatpush1.msra.mxu0 %v499
      %544 = vmatprep.subr.mxu0 0.0
      %545 = vmatpush1.msra.mxu0 %v498
      %546 = vmatprep.subr.mxu0 0.0
      %547 = vmatpush2.msra.mxu0 0.0
      %548 = vmatprep.subr.mxu0 0.0
      %549 = vmatpush2.msra.mxu0 0.0
      %550 = vmatprep.subr.mxu0 0.0
      %551 = vmatpush2.msra.mxu0 0.0
      %552 = vmatprep.subr.mxu0 0.0
      %553 = vmatpush2.msra.mxu0 0.0
      %554 = vmatprep.subr.mxu0 0.0
      %555 = vmatpush2.msra.mxu0 0.0
      %556 = vmatprep.subr.mxu0 0.0
      %557 = vmatpush2.msra.mxu0 0.0
      %558 = vmatprep.subr.mxu0 0.0
      %559 = vmatpush2.msra.mxu0 0.0
      %560 = vmatprep.subr.mxu0 0.0
      %561 = vmatpush2.msra.mxu0 0.0
      %562 = vmatprep.subr.mxu0 0.0
      %563 = vmatpush2.msra.mxu0 0.0
      %564 = vmatprep.subr.mxu0 0.0
      %565 = vmatpush2.msra.mxu0 0.0
      %566 = vmatprep.subr.mxu0 0.0
      %567 = vmatpush2.msra.mxu0 0.0
      %568 = vmatprep.subr.mxu0 0.0
      %569 = vmatpush2.msra.mxu0 0.0
      %570 = vmatprep.subr.mxu0 0.0
      %571 = vmatpush2.msra.mxu0 0.0
      %572 = vmatprep.subr.mxu0 0.0
      %573 = vmatpush2.msra.mxu0 0.0
      %574 = vmatprep.subr.mxu0 0.0
      %575 = vmatpush2.msra.mxu0 0.0
      %576 = vmatprep.subr.mxu0 0.0
      %577 = vmatpush2.msra.mxu0 0.0
      %578 = vmatprep.mubr.f32.mxu0 0.0
      %579 = vmatmul.mubr.f32.gmra.mxu0 %v312
      %v580 = vpop.f32.mrf.mxu0
      %v581 = vadd.f32 0.0, %v580
      %v582 = vpop.f32.mrf.mxu0
      %583 = vmatprep.mubr.f32.mxu0 0.0
      %584 = vmatmul.mubr.f32.gmra.mxu0 %v313
      %v585 = vpop.f32.mrf.mxu0
      %v586 = vadd.f32 0.0, %v585
      %v587 = vpop.f32.mrf.mxu0
      %588 = vdwg.mxu0
      %v589 = vadd.f32 %v489, %v581
      %v590 = vadd.f32 %v494, %v586
      %591 = vst [vmem:[%s233] sm:$0xff] %v589
      %592 = vst [vmem:[%s233 + $0x8] sm:$0xff] %v590
      %v593 = vadd.f32 %v589, %v590
      %v594 = vrot.slane %v593, 4
      %v595 = vadd.f32 %v593, %v594
      %v596 = vrot.slane %v595, 2
      %v597 = vadd.f32 %v595, %v596
      %v598 = vrot.slane %v597, 1
      %v599 = vadd.f32 %v597, %v598
      %600 = vst [vmem:[%s238] sm:$0x1] %v599
      %v601 = vmul.f32 %v589, %v589
      %v602 = vmul.f32 %v590, %v590
      %v603 = vadd.f32 %v601, %v602
      %v604 = vrot.slane %v603, 4
      %v605 = vadd.f32 %v603, %v604
      %v606 = vrot.slane %v605, 2
      %v607 = vadd.f32 %v605, %v606
      %v608 = vrot.slane %v607, 1
      %v609 = vadd.f32 %v607, %v608
      %610 = vst [vmem:[%s238 + $0x1] sm:$0x1] %v609
      %s611 = smul.u32 2, %s17
      %p612 = scmp.lt.s32.totalorder %s611, 3
      %s613 = scalar_select %p612, %s611, 3
      %s614 = smul.addr %s613, 8
      %s615 = scalar_lea.vmem %s4, %s614
      %p616 = scmp.lt.s32.totalorder %s17, 1
      %s617 = scalar_select %p616, %s17, 1
      %s618 = smul.addr %s617, 2
      %s619 = scalar_lea.vmem %s5, %s618
      // Predicated region
      $region37: #{conv_block_forward.3} parent=35 // pred_check
        %p620 = pneg %p124
      $region38: #{conv_block_forward.3} parent=35 // pred_check_branch
        %622 = sbr.rel (%p620) target = $region40
      $region39: #{conv_block_forward.3} parent=35 // pred_region
        %s623 = smul.u32 2, %s17
      $region40: #{conv_block_forward.3} parent=35 // pred_fallthru
        _
      // Predicated region
      $region41: #{conv_block_forward.3} parent=35 // pred_check
        %p624 = pneg %p150
      $region42: #{conv_block_forward.3} parent=35 // pred_check_branch
        %626 = sbr.rel (%p624) target = $region44
      $region43: #{conv_block_forward.3} parent=35 // pred_region
        _
      $region44: #{conv_block_forward.3} parent=35 // pred_fallthru
        _
    $region36: #{conv_block_forward.3} parent=5 // pred_fallthru
      _
    %p627 = scmp.le.s32.totalorder 2, %s12
    // Predicated region
    $region45: #{conv_block_forward.3} parent=5 // pred_check
      %p628 = pneg %p627
    $region46: #{conv_block_forward.3} parent=5 // pred_check_branch
      %630 = sbr.rel (%p628) target = $region48
    $region47: #{conv_block_forward.3} parent=5 // pred_region
      %s631 = ssub.s32 %s12, 2
      // Predicated region
      $region49: #{conv_block_forward.3} parent=47 // pred_check
        %p632 = pneg %p130
      $region50: #{conv_block_forward.3} parent=47 // pred_check_branch
        %634 = sbr.rel (%p632) target = $region52
      $region51: #{conv_block_forward.3} parent=47 // pred_region
        %s635 = smul.u32 2, %s18
        %p636 = scmp.lt.s32.totalorder %s635, 3
        %s637 = scalar_select %p636, %s635, 3
        %s638 = smul.addr %s637, 8
        %s639 = scalar_lea.vmem %s4, %s638
      $region52: #{conv_block_forward.3} parent=47 // pred_fallthru
        _
      // Predicated region
      $region53: #{conv_block_forward.3} parent=47 // pred_check
        %p640 = pneg %p156
      $region54: #{conv_block_forward.3} parent=47 // pred_check_branch
        %642 = sbr.rel (%p640) target = $region56
      $region55: #{conv_block_forward.3} parent=47 // pred_region
        %p643 = scmp.lt.s32.totalorder %s18, 1
        %s644 = scalar_select %p643, %s18, 1
        %s645 = smul.addr %s644, 2
        %s646 = scalar_lea.vmem %s5, %s645
      $region56: #{conv_block_forward.3} parent=47 // pred_fallthru
        _
    $region48: #{conv_block_forward.3} parent=5 // pred_fallthru
      _
  $region6: #{conv_block_forward.3} parent=0 // loop_footer
    %s16 = sadd.s32 1, %s12
  $region7: #{conv_block_forward.3} parent=0 // loop_footer_branch
    %11 = sbr.rel target = $region3
  $region8: #{conv_block_forward.3} parent=0 // loop_exit
    _

</llo_original>
